<compile_context>
chip_gen: v7x
topology: tpu7x:2x2x1
jax: 0.10.0
libtpu: 0.0.40
codegen_flags: <defaults>
</compile_context>

<pallas_src>
import math
from functools import partial

import jax
import jax.numpy as jnp
from jax.experimental import pallas as pl
from jax.experimental.pallas import tpu as pltpu


def _vmem_limit_bytes():
    # Per-generation scoped-VMEM budget: ~3/4 of physical capacity, capped at
    # 100 MiB (v5e/v6e: 128 MiB phys -> 96 MiB; v7x: 64 MiB phys -> 48 MiB).
    try:
        cap = int(getattr(pltpu.get_tpu_info(), "vmem_capacity_bytes", 64 << 20))
    except Exception:
        cap = 64 << 20
    return int(min(cap * 3 // 4, 100 << 20))


def _pick_tile(n, candidates):
    for t in candidates:
        if n % t == 0:
            return t
    return n  # full extent (always legal)


# ----------------------- fused attention sublayer kernel ----------------------- #

def _attn_sublayer_kernel(vl_ref, x_ref, wqkv_ref, bqkv_ref, wo_ref, bo_ref,
                          g_ref, beta_ref, o_ref, k_sc, v_sc, ctx_sc,
                          *, num_heads, q_tile, eps):
    b = pl.program_id(0)
    qi = pl.program_id(1)
    S, D = x_ref.shape[1], x_ref.shape[2]
    dk = D // num_heads

    # K/V projection of the full sequence, once per batch element; kept resident
    # in bf16 VMEM scratch across all q-tiles of this batch (qi axis is
    # 'arbitrary' because of this cross-step dependency).
    @pl.when(qi == 0)
    def _():
        x_all = x_ref[0].astype(jnp.bfloat16)                          # (S, D)
        kv = jnp.dot(x_all, wqkv_ref[:, D:],
                     preferred_element_type=jnp.float32)               # (S, 2D) f32
        k_sc[...] = (kv[:, :D] + bqkv_ref[:, D:2 * D]).astype(jnp.bfloat16)
        v_sc[...] = (kv[:, D:] + bqkv_ref[:, 2 * D:]).astype(jnp.bfloat16)

    # Q projection for this q-row tile only (1/sqrt(d_k) already folded into W_q).
    q_start = pl.multiple_of(qi * q_tile, q_tile)
    xq = x_ref[0, pl.ds(q_start, q_tile), :]                           # (tq, D) f32 residual
    q = jnp.dot(xq.astype(jnp.bfloat16), wqkv_ref[:, :D],
                preferred_element_type=jnp.float32) + bqkv_ref[:, :D]  # (tq, D) f32

    # Key-padding bias built in-kernel from the scalar-prefetched lengths
    # (replaces the dense (B,S,S) mask stream); hoisted out of the head loop.
    # Additive -1e9 matches torch masked_fill(mask==0, -1e9) + softmax up to
    # negligible numerical differences.
    key_pos = jax.lax.broadcasted_iota(jnp.int32, (1, S), 1)
    bias = jnp.where(key_pos < vl_ref[b], 0.0, -1e9).astype(jnp.float32)  # (1, S)

    # Per-head attention; outputs written into a lane-dense (tq, D) scratch slab.
    for h in range(num_heads):
        lo, hi = h * dk, (h + 1) * dk
        qh = q[:, lo:hi].astype(jnp.bfloat16)                          # (tq, dk)
        s = jax.lax.dot_general(qh, k_sc[:, lo:hi], (((1,), (1,)), ((), ())),
                                preferred_element_type=jnp.float32)    # (tq, S)
        s = s + bias
        m = jnp.max(s, axis=-1, keepdims=True)
        p = jnp.exp(s - m)                                             # f32 softmax
        p = p * pl.reciprocal(jnp.sum(p, axis=-1, keepdims=True), approx=True)
        ctx_sc[:, lo:hi] = jnp.dot(p.astype(jnp.bfloat16), v_sc[:, lo:hi],
                                   preferred_element_type=jnp.float32)

    # Output projection + residual add + LayerNorm(norm1) epilogue (f32).
    y = jnp.dot(ctx_sc[...].astype(jnp.bfloat16), wo_ref[...],
                preferred_element_type=jnp.float32) + bo_ref[...]
    r = xq + y
    mean = jnp.mean(r, axis=-1, keepdims=True)
    c = r - mean
    var = jnp.mean(c * c, axis=-1, keepdims=True)                      # biased var
    o_ref[0] = c * jax.lax.rsqrt(var + eps) * g_ref[...] + beta_ref[...]


def attention_sublayer(x, valid_len, wqkv, bqkv, wo, bo, gamma, beta,
                       num_heads, eps=1e-5):
    """x: (B,S,D) f32, valid_len: (B,) int32 -> LayerNorm(x + SelfAttn(x))."""
    B, S, D = x.shape
    tq = _pick_tile(S, (256, 128))        # q-row tile; <=256 keeps v7x VMEM safe
    nq = S // tq
    grid_spec = pltpu.PrefetchScalarGridSpec(
        num_scalar_prefetch=1,
        grid=(B, nq),
        in_specs=[
            pl.BlockSpec((1, S, D), lambda b, qi, vl: (b, 0, 0)),      # x (full seq/batch)
            pl.BlockSpec((D, 3 * D), lambda b, qi, vl: (0, 0)),        # W_qkv (bf16)
            pl.BlockSpec((1, 3 * D), lambda b, qi, vl: (0, 0)),        # b_qkv (f32)
            pl.BlockSpec((D, D), lambda b, qi, vl: (0, 0)),            # W_o   (bf16)
            pl.BlockSpec((1, D), lambda b, qi, vl: (0, 0)),            # b_o
            pl.BlockSpec((1, D), lambda b, qi, vl: (0, 0)),            # gamma
            pl.BlockSpec((1, D), lambda b, qi, vl: (0, 0)),            # beta
        ],
        out_specs=pl.BlockSpec((1, tq, D), lambda b, qi, vl: (b, qi, 0)),
        scratch_shapes=[
            pltpu.VMEM((S, D), jnp.bfloat16),      # resident K per batch
            pltpu.VMEM((S, D), jnp.bfloat16),      # resident V per batch
            pltpu.VMEM((tq, D), jnp.float32),      # lane-dense context slab
        ],
    )
    return pl.pallas_call(
        partial(_attn_sublayer_kernel, num_heads=num_heads, q_tile=tq, eps=eps),
        out_shape=jax.ShapeDtypeStruct((B, S, D), jnp.float32),
        grid_spec=grid_spec,
        compiler_params=pltpu.CompilerParams(
            dimension_semantics=("parallel", "arbitrary"),
            vmem_limit_bytes=_vmem_limit_bytes()),
    )(valid_len, x, wqkv, bqkv.reshape(1, 3 * D), wo, bo.reshape(1, D),
      gamma.reshape(1, D), beta.reshape(1, D))


# --------------------------- fused FFN sublayer kernel -------------------------- #

def _ffn_sublayer_kernel(x_ref, w1_ref, b1_ref, w2_ref, b2_ref, g_ref, beta_ref,
                         o_ref, acc_ref, *, eps):
    fi = pl.program_id(1)

    @pl.when(fi == 0)
    def _():
        acc_ref[...] = jnp.zeros_like(acc_ref)

    x = x_ref[...]                                                     # (tr, D) f32
    h = jnp.dot(x.astype(jnp.bfloat16), w1_ref[...],
                preferred_element_type=jnp.float32) + b1_ref[...]      # (tr, tf) f32
    h = jnp.maximum(h, 0.0)                                            # ReLU per F-tile
    acc_ref[...] += jnp.dot(h.astype(jnp.bfloat16), w2_ref[...],
                            preferred_element_type=jnp.float32)        # (tr, D) f32

    @pl.when(fi == pl.num_programs(1) - 1)
    def _():
        r = x + acc_ref[...] + b2_ref[...]                             # residual
        mean = jnp.mean(r, axis=-1, keepdims=True)
        c = r - mean
        var = jnp.mean(c * c, axis=-1, keepdims=True)
        o_ref[...] = c * jax.lax.rsqrt(var + eps) * g_ref[...] + beta_ref[...]


def ffn_sublayer(x, w1, b1, w2, b2, gamma, beta, eps=1e-5):
    """x: (B,S,D) -> LayerNorm(x + FFN(x)); rows tiled, hidden dim F reduced."""
    B, S, D = x.shape
    F = w1.shape[1]
    rows = B * S
    tr = _pick_tile(rows, (512, 256, 128, 64, 32, 16, 8))
    tf = _pick_tile(F, (1024, 512, 256, 128))          # bounds weight residency
    x2 = x.reshape(rows, D)
    out = pl.pallas_call(
        partial(_ffn_sublayer_kernel, eps=eps),
        out_shape=jax.ShapeDtypeStruct((rows, D), jnp.float32),
        grid=(rows // tr, F // tf),
        in_specs=[
            pl.BlockSpec((tr, D), lambda i, fi: (i, 0)),
            pl.BlockSpec((D, tf), lambda i, fi: (0, fi)),   # W1 (bf16) F-tile
            pl.BlockSpec((1, tf), lambda i, fi: (0, fi)),   # b1 F-tile
            pl.BlockSpec((tf, D), lambda i, fi: (fi, 0)),   # W2 (bf16) F-tile
            pl.BlockSpec((1, D), lambda i, fi: (0, 0)),     # b2
            pl.BlockSpec((1, D), lambda i, fi: (0, 0)),     # gamma
            pl.BlockSpec((1, D), lambda i, fi: (0, 0)),     # beta
        ],
        out_specs=pl.BlockSpec((tr, D), lambda i, fi: (i, 0)),
        scratch_shapes=[pltpu.VMEM((tr, D), jnp.float32)],  # f32 accumulator
        compiler_params=pltpu.CompilerParams(
            dimension_semantics=("parallel", "arbitrary"),
            vmem_limit_bytes=_vmem_limit_bytes()),
    )(x2, w1, b1.reshape(1, F), w2, b2.reshape(1, D),
      gamma.reshape(1, D), beta.reshape(1, D))
    return out.reshape(B, S, D)


# --------------------------------- module glue ---------------------------------- #

def _init_linear(key, fan_in, fan_out):
    # PyTorch nn.Linear default init: U(-1/sqrt(fan_in), 1/sqrt(fan_in)).
    kw, kb = jax.random.split(key)
    bound = 1.0 / math.sqrt(fan_in)
    w = jax.random.uniform(kw, (fan_in, fan_out), jnp.float32, -bound, bound)
    b = jax.random.uniform(kb, (fan_out,), jnp.float32, -bound, bound)
    return w, b


def init_encoder_params(key, d_model, num_heads, d_ff):
    ks = jax.random.split(key, 6)
    wq, bq = _init_linear(ks[0], d_model, d_model)
    wk, bk = _init_linear(ks[1], d_model, d_model)
    wv, bv = _init_linear(ks[2], d_model, d_model)
    wo, bo = _init_linear(ks[3], d_model, d_model)
    w1, b1 = _init_linear(ks[4], d_model, d_ff)
    w2, b2 = _init_linear(ks[5], d_ff, d_model)
    # Fold 1/sqrt(d_k) into the Q projection once at init-time.
    scale = 1.0 / math.sqrt(d_model // num_heads)
    wq, bq = wq * scale, bq * scale
    bf16 = jnp.bfloat16
    return {
        # Fused (D, 3D) QKV weight, stored bf16 for the MXU; biases stay f32.
        "W_qkv": (jnp.concatenate([wq, wk, wv], axis=1).astype(bf16),
                  jnp.concatenate([bq, bk, bv], axis=0)),
        "W_o": (wo.astype(bf16), bo),
        "fc1": (w1.astype(bf16), b1),
        "fc2": (w2.astype(bf16), b2),
        "norm1": (jnp.ones((d_model,), jnp.float32),
                  jnp.zeros((d_model,), jnp.float32)),
        "norm2": (jnp.ones((d_model,), jnp.float32),
                  jnp.zeros((d_model,), jnp.float32)),
    }


def encoder_forward(params, x, valid_len, num_heads):
    # nn.Dropout is identity (eval mode).  The torch-style dense (B,1,S,S) 0/1
    # key-padding mask is replaced by per-batch key lengths, expanded in-kernel.
    # TODO(synk): arbitrary non-padding attention masks and training-mode
    # dropout RNG are not reproduced.
    x = attention_sublayer(x, valid_len, *params["W_qkv"], *params["W_o"],
                           *params["norm1"], num_heads=num_heads)
    x = ffn_sublayer(x, *params["fc1"], *params["fc2"], *params["norm2"])
    return x


# ------------------------------------ main -------------------------------------- #

if __name__ == "__main__":
    # Small shapes consistent with the module (scaled-down d_model/d_ff).
    B, S = 2, 8
    d_model, num_heads, d_ff = 32, 4, 64

    key = jax.random.PRNGKey(0)
    kp, kx = jax.random.split(key)

    params = init_encoder_params(kp, d_model, num_heads, d_ff)
    x = jax.random.normal(kx, (B, S, d_model), jnp.float32)

    # Key-padding mask: batch 0 attends to all 8 keys, batch 1 to the first 6
    # (equivalent to the torch (B,1,S,S) 0/1 mask built from these lengths).
    valid_len = jnp.array([S, 6], dtype=jnp.int32)

    out = encoder_forward(params, x, valid_len, num_heads)
    out = jax.block_until_ready(out)
    assert out.shape == (B, S, d_model) and bool(jnp.all(jnp.isfinite(out)))
    print("KERNEL_OK")
</pallas_src>

<mosaic_0001>
module attributes {stable_mosaic.version = 11 : i64} {
  func.func @_attn_sublayer_kernel(%arg0: i32, %arg1: i32, %arg2: memref<2xi32, #tpu.memory_space<smem>>, %arg3: memref<1x8x32xf32, #tpu.memory_space<vmem>>, %arg4: memref<32x96xbf16, #tpu.memory_space<vmem>>, %arg5: memref<1x96xf32, #tpu.memory_space<vmem>>, %arg6: memref<32x32xbf16, #tpu.memory_space<vmem>>, %arg7: memref<1x32xf32, #tpu.memory_space<vmem>>, %arg8: memref<1x32xf32, #tpu.memory_space<vmem>>, %arg9: memref<1x32xf32, #tpu.memory_space<vmem>>, %arg10: memref<1x8x32xf32, #tpu.memory_space<vmem>>, %arg11: memref<8x32xbf16, #tpu.memory_space<vmem>>, %arg12: memref<8x32xbf16, #tpu.memory_space<vmem>>, %arg13: memref<8x32xf32, #tpu.memory_space<vmem>>) attributes {dimension_semantics = [#tpu.dimension_semantics<parallel>, #tpu.dimension_semantics<arbitrary>], iteration_bounds = array<i64: 2, 1>, scalar_prefetch = 1 : i64, scratch_operands = 3 : i64, tpu.core_type = #tpu.core_type<tc>, window_params = [{transform_indices = @transform_0, window_bounds = array<i64: 1, 8, 32>}, {pipeline_mode = #tpu.pipeline_mode<synchronous>, transform_indices = @transform_1, window_bounds = array<i64: 32, 96>}, {pipeline_mode = #tpu.pipeline_mode<synchronous>, transform_indices = @transform_2, window_bounds = array<i64: 1, 96>}, {pipeline_mode = #tpu.pipeline_mode<synchronous>, transform_indices = @transform_3, window_bounds = array<i64: 32, 32>}, {pipeline_mode = #tpu.pipeline_mode<synchronous>, transform_indices = @transform_4, window_bounds = array<i64: 1, 32>}, {pipeline_mode = #tpu.pipeline_mode<synchronous>, transform_indices = @transform_5, window_bounds = array<i64: 1, 32>}, {pipeline_mode = #tpu.pipeline_mode<synchronous>, transform_indices = @transform_6, window_bounds = array<i64: 1, 32>}, {transform_indices = @transform_7, window_bounds = array<i64: 1, 8, 32>}]} {
    %c0_i32 = arith.constant 0 : i32
    %0 = arith.cmpi eq, %arg1, %c0_i32 : i32
    %1 = arith.extui %0 : i1 to i32
    %c0_i32_0 = arith.constant 0 : i32
    %2 = arith.cmpi ne, %1, %c0_i32_0 : i32
    scf.if %2 {
      %c0_64 = arith.constant 0 : index
      %c0_65 = arith.constant 0 : index
      %c0_66 = arith.constant 0 : index
      %135 = vector.load %arg3[%c0_64, %c0_65, %c0_66] : memref<1x8x32xf32, #tpu.memory_space<vmem>>, vector<1x8x32xf32>
      %136 = vector.shape_cast %135 : vector<1x8x32xf32> to vector<8x32xf32>
      %137 = arith.truncf %136 : vector<8x32xf32> to vector<8x32xbf16>
      %c0_67 = arith.constant 0 : index
      %c32 = arith.constant 32 : index
      %138 = vector.load %arg4[%c0_67, %c32] : memref<32x96xbf16, #tpu.memory_space<vmem>>, vector<32x64xbf16>
      %cst_68 = arith.constant dense<0.000000e+00> : vector<8x64xf32>
      %139 = tpu.matmul %137, %138, %cst_68 {dimension_numbers = #tpu.dot_dimension_numbers<[1], [0], [0], [1], [0, 0, 1, 1], [], []>} : vector<8x32xbf16>, vector<32x64xbf16>, vector<8x64xf32> -> vector<8x64xf32>
      %140 = vector.extract_strided_slice %139 {offsets = [0, 0], sizes = [8, 32], strides = [1, 1]} : vector<8x64xf32> to vector<8x32xf32>
      %c0_69 = arith.constant 0 : index
      %c32_70 = arith.constant 32 : index
      %141 = vector.load %arg5[%c0_69, %c32_70] : memref<1x96xf32, #tpu.memory_space<vmem>>, vector<1x32xf32>
      %142 = vector.broadcast %141 : vector<1x32xf32> to vector<8x32xf32>
      %143 = arith.addf %140, %142 : vector<8x32xf32>
      %144 = arith.truncf %143 : vector<8x32xf32> to vector<8x32xbf16>
      %c0_71 = arith.constant 0 : index
      %c0_72 = arith.constant 0 : index
      %145 = vector.load %arg11[%c0_71, %c0_72] : memref<8x32xbf16, #tpu.memory_space<vmem>>, vector<8x32xbf16>
      tpu.vector_store %arg11[%c0_71, %c0_72], %144 {strides = array<i32>} : memref<8x32xbf16, #tpu.memory_space<vmem>>, vector<8x32xbf16>,
      %146 = vector.extract_strided_slice %139 {offsets = [0, 32], sizes = [8, 32], strides = [1, 1]} : vector<8x64xf32> to vector<8x32xf32>
      %c0_73 = arith.constant 0 : index
      %c64 = arith.constant 64 : index
      %147 = vector.load %arg5[%c0_73, %c64] : memref<1x96xf32, #tpu.memory_space<vmem>>, vector<1x32xf32>
      %148 = vector.broadcast %147 : vector<1x32xf32> to vector<8x32xf32>
      %149 = arith.addf %146, %148 : vector<8x32xf32>
      %150 = arith.truncf %149 : vector<8x32xf32> to vector<8x32xbf16>
      %c0_74 = arith.constant 0 : index
      %c0_75 = arith.constant 0 : index
      %151 = vector.load %arg12[%c0_74, %c0_75] : memref<8x32xbf16, #tpu.memory_space<vmem>>, vector<8x32xbf16>
      tpu.vector_store %arg12[%c0_74, %c0_75], %150 {strides = array<i32>} : memref<8x32xbf16, #tpu.memory_space<vmem>>, vector<8x32xbf16>,
    } else {
    }
    %c8_i32 = arith.constant 8 : i32
    %3 = arith.muli %arg1, %c8_i32 : i32
    %4 = tpu.assume_multiple %3, 8 : i32
    %c0 = arith.constant 0 : index
    %5 = arith.index_cast %4 : i32 to index
    %c0_1 = arith.constant 0 : index
    %6 = vector.load %arg3[%c0, %5, %c0_1] : memref<1x8x32xf32, #tpu.memory_space<vmem>>, vector<1x8x32xf32>
    %7 = vector.shape_cast %6 : vector<1x8x32xf32> to vector<8x32xf32>
    %8 = arith.truncf %7 : vector<8x32xf32> to vector<8x32xbf16>
    %c0_2 = arith.constant 0 : index
    %c0_3 = arith.constant 0 : index
    %9 = vector.load %arg4[%c0_2, %c0_3] : memref<32x96xbf16, #tpu.memory_space<vmem>>, vector<32x32xbf16>
    %cst = arith.constant dense<0.000000e+00> : vector<8x32xf32>
    %10 = tpu.matmul %8, %9, %cst {dimension_numbers = #tpu.dot_dimension_numbers<[1], [0], [0], [1], [0, 0, 1, 1], [], []>} : vector<8x32xbf16>, vector<32x32xbf16>, vector<8x32xf32> -> vector<8x32xf32>
    %c0_4 = arith.constant 0 : index
    %c0_5 = arith.constant 0 : index
    %11 = vector.load %arg5[%c0_4, %c0_5] : memref<1x96xf32, #tpu.memory_space<vmem>>, vector<1x32xf32>
    %12 = vector.broadcast %11 : vector<1x32xf32> to vector<8x32xf32>
    %13 = arith.addf %10, %12 : vector<8x32xf32>
    %14 = tpu.iota {dimensions = array<i32: 1>} : vector<1x8xi32>
    %15 = arith.index_cast %arg0 : i32 to index
    %16 = memref.load %arg2[%15] : memref<2xi32, #tpu.memory_space<smem>>
    %17 = vector.broadcast %16 : i32 to vector<1x8xi32>
    %18 = arith.cmpi slt, %14, %17 : vector<1x8xi32>
    %cst_6 = arith.constant 0.000000e+00 : f32
    %cst_7 = arith.constant -1.000000e+09 : f32
    %19 = vector.broadcast %cst_6 : f32 to vector<1x8xf32>
    %20 = vector.broadcast %cst_7 : f32 to vector<1x8xf32>
    %21 = arith.select %18, %19, %20 : vector<1x8xi1>, vector<1x8xf32>
    %22 = vector.extract_strided_slice %13 {offsets = [0, 0], sizes = [8, 8], strides = [1, 1]} : vector<8x32xf32> to vector<8x8xf32>
    %23 = arith.truncf %22 : vector<8x8xf32> to vector<8x8xbf16>
    %c0_8 = arith.constant 0 : index
    %c0_9 = arith.constant 0 : index
    %24 = vector.load %arg11[%c0_8, %c0_9] : memref<8x32xbf16, #tpu.memory_space<vmem>>, vector<8x8xbf16>
    %cst_10 = arith.constant dense<0.000000e+00> : vector<8x8xf32>
    %25 = tpu.matmul %23, %24, %cst_10 {dimension_numbers = #tpu.dot_dimension_numbers<[1], [1], [0], [0], [0, 0, 1, 0], [], []>} : vector<8x8xbf16>, vector<8x8xbf16>, vector<8x8xf32> -> vector<8x8xf32>
    %26 = vector.broadcast %21 : vector<1x8xf32> to vector<8x8xf32>
    %27 = arith.addf %25, %26 : vector<8x8xf32>
    %cst_11 = arith.constant dense<0xFF800000> : vector<8xf32>
    %28 = vector.multi_reduction <maximumf>, %27, %cst_11 [1] : vector<8x8xf32> to vector<8xf32>
    %29 = vector.shape_cast %28 : vector<8xf32> to vector<8x1xf32>
    %30 = vector.broadcast %29 : vector<8x1xf32> to vector<8x8xf32>
    %31 = arith.subf %27, %30 : vector<8x8xf32>
    %32 = math.exp %31 : vector<8x8xf32>
    %cst_12 = arith.constant dense<0.000000e+00> : vector<8xf32>
    %33 = vector.multi_reduction <add>, %32, %cst_12 [1] : vector<8x8xf32> to vector<8xf32>
    %34 = vector.shape_cast %33 : vector<8xf32> to vector<8x1xf32>
    %35 = tpu.reciprocal %34 {approx = true} : vector<8x1xf32> -> vector<8x1xf32>
    %36 = vector.broadcast %35 : vector<8x1xf32> to vector<8x8xf32>
    %37 = arith.mulf %32, %36 : vector<8x8xf32>
    %38 = arith.truncf %37 : vector<8x8xf32> to vector<8x8xbf16>
    %c0_13 = arith.constant 0 : index
    %c0_14 = arith.constant 0 : index
    %39 = vector.load %arg12[%c0_13, %c0_14] : memref<8x32xbf16, #tpu.memory_space<vmem>>, vector<8x8xbf16>
    %cst_15 = arith.constant dense<0.000000e+00> : vector<8x8xf32>
    %40 = tpu.matmul %38, %39, %cst_15 {dimension_numbers = #tpu.dot_dimension_numbers<[1], [0], [0], [1], [0, 0, 1, 1], [], []>} : vector<8x8xbf16>, vector<8x8xbf16>, vector<8x8xf32> -> vector<8x8xf32>
    %c0_16 = arith.constant 0 : index
    %c0_17 = arith.constant 0 : index
    %41 = vector.load %arg13[%c0_16, %c0_17] : memref<8x32xf32, #tpu.memory_space<vmem>>, vector<8x8xf32>
    tpu.vector_store %arg13[%c0_16, %c0_17], %40 {strides = array<i32>} : memref<8x32xf32, #tpu.memory_space<vmem>>, vector<8x8xf32>,
    %42 = vector.extract_strided_slice %13 {offsets = [0, 8], sizes = [8, 8], strides = [1, 1]} : vector<8x32xf32> to vector<8x8xf32>
    %43 = arith.truncf %42 : vector<8x8xf32> to vector<8x8xbf16>
    %c0_18 = arith.constant 0 : index
    %c8 = arith.constant 8 : index
    %44 = vector.load %arg11[%c0_18, %c8] : memref<8x32xbf16, #tpu.memory_space<vmem>>, vector<8x8xbf16>
    %cst_19 = arith.constant dense<0.000000e+00> : vector<8x8xf32>
    %45 = tpu.matmul %43, %44, %cst_19 {dimension_numbers = #tpu.dot_dimension_numbers<[1], [1], [0], [0], [0, 0, 1, 0], [], []>} : vector<8x8xbf16>, vector<8x8xbf16>, vector<8x8xf32> -> vector<8x8xf32>
    %46 = vector.broadcast %21 : vector<1x8xf32> to vector<8x8xf32>
    %47 = arith.addf %45, %46 : vector<8x8xf32>
    %cst_20 = arith.constant dense<0xFF800000> : vector<8xf32>
    %48 = vector.multi_reduction <maximumf>, %47, %cst_20 [1] : vector<8x8xf32> to vector<8xf32>
    %49 = vector.shape_cast %48 : vector<8xf32> to vector<8x1xf32>
    %50 = vector.broadcast %49 : vector<8x1xf32> to vector<8x8xf32>
    %51 = arith.subf %47, %50 : vector<8x8xf32>
    %52 = math.exp %51 : vector<8x8xf32>
    %cst_21 = arith.constant dense<0.000000e+00> : vector<8xf32>
    %53 = vector.multi_reduction <add>, %52, %cst_21 [1] : vector<8x8xf32> to vector<8xf32>
    %54 = vector.shape_cast %53 : vector<8xf32> to vector<8x1xf32>
    %55 = tpu.reciprocal %54 {approx = true} : vector<8x1xf32> -> vector<8x1xf32>
    %56 = vector.broadcast %55 : vector<8x1xf32> to vector<8x8xf32>
    %57 = arith.mulf %52, %56 : vector<8x8xf32>
    %58 = arith.truncf %57 : vector<8x8xf32> to vector<8x8xbf16>
    %c0_22 = arith.constant 0 : index
    %c8_23 = arith.constant 8 : index
    %59 = vector.load %arg12[%c0_22, %c8_23] : memref<8x32xbf16, #tpu.memory_space<vmem>>, vector<8x8xbf16>
    %cst_24 = arith.constant dense<0.000000e+00> : vector<8x8xf32>
    %60 = tpu.matmul %58, %59, %cst_24 {dimension_numbers = #tpu.dot_dimension_numbers<[1], [0], [0], [1], [0, 0, 1, 1], [], []>} : vector<8x8xbf16>, vector<8x8xbf16>, vector<8x8xf32> -> vector<8x8xf32>
    %c0_25 = arith.constant 0 : index
    %c8_26 = arith.constant 8 : index
    %61 = vector.load %arg13[%c0_25, %c8_26] : memref<8x32xf32, #tpu.memory_space<vmem>>, vector<8x8xf32>
    tpu.vector_store %arg13[%c0_25, %c8_26], %60 {strides = array<i32>} : memref<8x32xf32, #tpu.memory_space<vmem>>, vector<8x8xf32>,
    %62 = vector.extract_strided_slice %13 {offsets = [0, 16], sizes = [8, 8], strides = [1, 1]} : vector<8x32xf32> to vector<8x8xf32>
    %63 = arith.truncf %62 : vector<8x8xf32> to vector<8x8xbf16>
    %c0_27 = arith.constant 0 : index
    %c16 = arith.constant 16 : index
    %64 = vector.load %arg11[%c0_27, %c16] : memref<8x32xbf16, #tpu.memory_space<vmem>>, vector<8x8xbf16>
    %cst_28 = arith.constant dense<0.000000e+00> : vector<8x8xf32>
    %65 = tpu.matmul %63, %64, %cst_28 {dimension_numbers = #tpu.dot_dimension_numbers<[1], [1], [0], [0], [0, 0, 1, 0], [], []>} : vector<8x8xbf16>, vector<8x8xbf16>, vector<8x8xf32> -> vector<8x8xf32>
    %66 = vector.broadcast %21 : vector<1x8xf32> to vector<8x8xf32>
    %67 = arith.addf %65, %66 : vector<8x8xf32>
    %cst_29 = arith.constant dense<0xFF800000> : vector<8xf32>
    %68 = vector.multi_reduction <maximumf>, %67, %cst_29 [1] : vector<8x8xf32> to vector<8xf32>
    %69 = vector.shape_cast %68 : vector<8xf32> to vector<8x1xf32>
    %70 = vector.broadcast %69 : vector<8x1xf32> to vector<8x8xf32>
    %71 = arith.subf %67, %70 : vector<8x8xf32>
    %72 = math.exp %71 : vector<8x8xf32>
    %cst_30 = arith.constant dense<0.000000e+00> : vector<8xf32>
    %73 = vector.multi_reduction <add>, %72, %cst_30 [1] : vector<8x8xf32> to vector<8xf32>
    %74 = vector.shape_cast %73 : vector<8xf32> to vector<8x1xf32>
    %75 = tpu.reciprocal %74 {approx = true} : vector<8x1xf32> -> vector<8x1xf32>
    %76 = vector.broadcast %75 : vector<8x1xf32> to vector<8x8xf32>
    %77 = arith.mulf %72, %76 : vector<8x8xf32>
    %78 = arith.truncf %77 : vector<8x8xf32> to vector<8x8xbf16>
    %c0_31 = arith.constant 0 : index
    %c16_32 = arith.constant 16 : index
    %79 = vector.load %arg12[%c0_31, %c16_32] : memref<8x32xbf16, #tpu.memory_space<vmem>>, vector<8x8xbf16>
    %cst_33 = arith.constant dense<0.000000e+00> : vector<8x8xf32>
    %80 = tpu.matmul %78, %79, %cst_33 {dimension_numbers = #tpu.dot_dimension_numbers<[1], [0], [0], [1], [0, 0, 1, 1], [], []>} : vector<8x8xbf16>, vector<8x8xbf16>, vector<8x8xf32> -> vector<8x8xf32>
    %c0_34 = arith.constant 0 : index
    %c16_35 = arith.constant 16 : index
    %81 = vector.load %arg13[%c0_34, %c16_35] : memref<8x32xf32, #tpu.memory_space<vmem>>, vector<8x8xf32>
    tpu.vector_store %arg13[%c0_34, %c16_35], %80 {strides = array<i32>} : memref<8x32xf32, #tpu.memory_space<vmem>>, vector<8x8xf32>,
    %82 = vector.extract_strided_slice %13 {offsets = [0, 24], sizes = [8, 8], strides = [1, 1]} : vector<8x32xf32> to vector<8x8xf32>
    %83 = arith.truncf %82 : vector<8x8xf32> to vector<8x8xbf16>
    %c0_36 = arith.constant 0 : index
    %c24 = arith.constant 24 : index
    %84 = vector.load %arg11[%c0_36, %c24] : memref<8x32xbf16, #tpu.memory_space<vmem>>, vector<8x8xbf16>
    %cst_37 = arith.constant dense<0.000000e+00> : vector<8x8xf32>
    %85 = tpu.matmul %83, %84, %cst_37 {dimension_numbers = #tpu.dot_dimension_numbers<[1], [1], [0], [0], [0, 0, 1, 0], [], []>} : vector<8x8xbf16>, vector<8x8xbf16>, vector<8x8xf32> -> vector<8x8xf32>
    %86 = vector.broadcast %21 : vector<1x8xf32> to vector<8x8xf32>
    %87 = arith.addf %85, %86 : vector<8x8xf32>
    %cst_38 = arith.constant dense<0xFF800000> : vector<8xf32>
    %88 = vector.multi_reduction <maximumf>, %87, %cst_38 [1] : vector<8x8xf32> to vector<8xf32>
    %89 = vector.shape_cast %88 : vector<8xf32> to vector<8x1xf32>
    %90 = vector.broadcast %89 : vector<8x1xf32> to vector<8x8xf32>
    %91 = arith.subf %87, %90 : vector<8x8xf32>
    %92 = math.exp %91 : vector<8x8xf32>
    %cst_39 = arith.constant dense<0.000000e+00> : vector<8xf32>
    %93 = vector.multi_reduction <add>, %92, %cst_39 [1] : vector<8x8xf32> to vector<8xf32>
    %94 = vector.shape_cast %93 : vector<8xf32> to vector<8x1xf32>
    %95 = tpu.reciprocal %94 {approx = true} : vector<8x1xf32> -> vector<8x1xf32>
    %96 = vector.broadcast %95 : vector<8x1xf32> to vector<8x8xf32>
    %97 = arith.mulf %92, %96 : vector<8x8xf32>
    %98 = arith.truncf %97 : vector<8x8xf32> to vector<8x8xbf16>
    %c0_40 = arith.constant 0 : index
    %c24_41 = arith.constant 24 : index
    %99 = vector.load %arg12[%c0_40, %c24_41] : memref<8x32xbf16, #tpu.memory_space<vmem>>, vector<8x8xbf16>
    %cst_42 = arith.constant dense<0.000000e+00> : vector<8x8xf32>
    %100 = tpu.matmul %98, %99, %cst_42 {dimension_numbers = #tpu.dot_dimension_numbers<[1], [0], [0], [1], [0, 0, 1, 1], [], []>} : vector<8x8xbf16>, vector<8x8xbf16>, vector<8x8xf32> -> vector<8x8xf32>
    %c0_43 = arith.constant 0 : index
    %c24_44 = arith.constant 24 : index
    %101 = vector.load %arg13[%c0_43, %c24_44] : memref<8x32xf32, #tpu.memory_space<vmem>>, vector<8x8xf32>
    tpu.vector_store %arg13[%c0_43, %c24_44], %100 {strides = array<i32>} : memref<8x32xf32, #tpu.memory_space<vmem>>, vector<8x8xf32>,
    %c0_45 = arith.constant 0 : index
    %c0_46 = arith.constant 0 : index
    %102 = vector.load %arg13[%c0_45, %c0_46] : memref<8x32xf32, #tpu.memory_space<vmem>>, vector<8x32xf32>
    %103 = arith.truncf %102 : vector<8x32xf32> to vector<8x32xbf16>
    %c0_47 = arith.constant 0 : index
    %c0_48 = arith.constant 0 : index
    %104 = vector.load %arg6[%c0_47, %c0_48] : memref<32x32xbf16, #tpu.memory_space<vmem>>, vector<32x32xbf16>
    %cst_49 = arith.constant dense<0.000000e+00> : vector<8x32xf32>
    %105 = tpu.matmul %103, %104, %cst_49 {dimension_numbers = #tpu.dot_dimension_numbers<[1], [0], [0], [1], [0, 0, 1, 1], [], []>} : vector<8x32xbf16>, vector<32x32xbf16>, vector<8x32xf32> -> vector<8x32xf32>
    %c0_50 = arith.constant 0 : index
    %c0_51 = arith.constant 0 : index
    %106 = vector.load %arg7[%c0_50, %c0_51] : memref<1x32xf32, #tpu.memory_space<vmem>>, vector<1x32xf32>
    %107 = vector.broadcast %106 : vector<1x32xf32> to vector<8x32xf32>
    %108 = arith.addf %105, %107 : vector<8x32xf32>
    %109 = arith.addf %7, %108 : vector<8x32xf32>
    %cst_52 = arith.constant dense<0.000000e+00> : vector<8xf32>
    %110 = vector.multi_reduction <add>, %109, %cst_52 [1] : vector<8x32xf32> to vector<8xf32>
    %111 = vector.shape_cast %110 : vector<8xf32> to vector<8x1xf32>
    %cst_53 = arith.constant 3.200000e+01 : f32
    %112 = vector.broadcast %cst_53 : f32 to vector<8x1xf32>
    %113 = arith.divf %111, %112 : vector<8x1xf32>
    %114 = vector.broadcast %113 : vector<8x1xf32> to vector<8x32xf32>
    %115 = arith.subf %109, %114 : vector<8x32xf32>
    %116 = arith.mulf %115, %115 : vector<8x32xf32>
    %cst_54 = arith.constant dense<0.000000e+00> : vector<8xf32>
    %117 = vector.multi_reduction <add>, %116, %cst_54 [1] : vector<8x32xf32> to vector<8xf32>
    %118 = vector.shape_cast %117 : vector<8xf32> to vector<8x1xf32>
    %cst_55 = arith.constant 3.200000e+01 : f32
    %119 = vector.broadcast %cst_55 : f32 to vector<8x1xf32>
    %120 = arith.divf %118, %119 : vector<8x1xf32>
    %cst_56 = arith.constant 9.99999974E-6 : f32
    %121 = vector.broadcast %cst_56 : f32 to vector<8x1xf32>
    %122 = arith.addf %120, %121 : vector<8x1xf32>
    %123 = math.rsqrt %122 : vector<8x1xf32>
    %124 = vector.broadcast %123 : vector<8x1xf32> to vector<8x32xf32>
    %125 = arith.mulf %115, %124 : vector<8x32xf32>
    %c0_57 = arith.constant 0 : index
    %c0_58 = arith.constant 0 : index
    %126 = vector.load %arg8[%c0_57, %c0_58] : memref<1x32xf32, #tpu.memory_space<vmem>>, vector<1x32xf32>
    %127 = vector.broadcast %126 : vector<1x32xf32> to vector<8x32xf32>
    %128 = arith.mulf %125, %127 : vector<8x32xf32>
    %c0_59 = arith.constant 0 : index
    %c0_60 = arith.constant 0 : index
    %129 = vector.load %arg9[%c0_59, %c0_60] : memref<1x32xf32, #tpu.memory_space<vmem>>, vector<1x32xf32>
    %130 = vector.broadcast %129 : vector<1x32xf32> to vector<8x32xf32>
    %131 = arith.addf %128, %130 : vector<8x32xf32>
    %c0_61 = arith.constant 0 : index
    %c0_62 = arith.constant 0 : index
    %c0_63 = arith.constant 0 : index
    %132 = vector.load %arg10[%c0_61, %c0_62, %c0_63] : memref<1x8x32xf32, #tpu.memory_space<vmem>>, vector<1x8x32xf32>
    %133 = vector.shape_cast %132 : vector<1x8x32xf32> to vector<8x32xf32>
    %134 = vector.shape_cast %131 : vector<8x32xf32> to vector<1x8x32xf32>
    tpu.vector_store %arg10[%c0_61, %c0_62, %c0_63], %134 {strides = array<i32>} : memref<1x8x32xf32, #tpu.memory_space<vmem>>, vector<1x8x32xf32>,
    return
  }
  func.func @transform_0(%arg0: i32, %arg1: i32, %arg2: memref<2xi32, #tpu.memory_space<smem>>) -> (i32, i32, i32) {
    %c0_i32 = arith.constant 0 : i32
    %c0_i32_0 = arith.constant 0 : i32
    %c0_i32_1 = arith.constant 0 : i32
    return %arg0, %c0_i32, %c0_i32_0 : i32, i32, i32
  }
  func.func @transform_1(%arg0: i32, %arg1: i32, %arg2: memref<2xi32, #tpu.memory_space<smem>>) -> (i32, i32) {
    %c0_i32 = arith.constant 0 : i32
    %c0_i32_0 = arith.constant 0 : i32
    %c0_i32_1 = arith.constant 0 : i32
    return %c0_i32, %c0_i32_0 : i32, i32
  }
  func.func @transform_2(%arg0: i32, %arg1: i32, %arg2: memref<2xi32, #tpu.memory_space<smem>>) -> (i32, i32) {
    %c0_i32 = arith.constant 0 : i32
    %c0_i32_0 = arith.constant 0 : i32
    %c0_i32_1 = arith.constant 0 : i32
    return %c0_i32, %c0_i32_0 : i32, i32
  }
  func.func @transform_3(%arg0: i32, %arg1: i32, %arg2: memref<2xi32, #tpu.memory_space<smem>>) -> (i32, i32) {
    %c0_i32 = arith.constant 0 : i32
    %c0_i32_0 = arith.constant 0 : i32
    %c0_i32_1 = arith.constant 0 : i32
    return %c0_i32, %c0_i32_0 : i32, i32
  }
  func.func @transform_4(%arg0: i32, %arg1: i32, %arg2: memref<2xi32, #tpu.memory_space<smem>>) -> (i32, i32) {
    %c0_i32 = arith.constant 0 : i32
    %c0_i32_0 = arith.constant 0 : i32
    %c0_i32_1 = arith.constant 0 : i32
    return %c0_i32, %c0_i32_0 : i32, i32
  }
  func.func @transform_5(%arg0: i32, %arg1: i32, %arg2: memref<2xi32, #tpu.memory_space<smem>>) -> (i32, i32) {
    %c0_i32 = arith.constant 0 : i32
    %c0_i32_0 = arith.constant 0 : i32
    %c0_i32_1 = arith.constant 0 : i32
    return %c0_i32, %c0_i32_0 : i32, i32
  }
  func.func @transform_6(%arg0: i32, %arg1: i32, %arg2: memref<2xi32, #tpu.memory_space<smem>>) -> (i32, i32) {
    %c0_i32 = arith.constant 0 : i32
    %c0_i32_0 = arith.constant 0 : i32
    %c0_i32_1 = arith.constant 0 : i32
    return %c0_i32, %c0_i32_0 : i32, i32
  }
  func.func @transform_7(%arg0: i32, %arg1: i32, %arg2: memref<2xi32, #tpu.memory_space<smem>>) -> (i32, i32, i32) {
    %c0_i32 = arith.constant 0 : i32
    %c0_i32_0 = arith.constant 0 : i32
    return %arg0, %arg1, %c0_i32 : i32, i32, i32
  }
}

</mosaic_0001>

<llo_original>
// kernel: tpu_custom_call.1
$region0: #{tpu_custom_call.1}
  #allocation0 [shape = 'u32[]', space=smem, size = 0x4, offset = 0x4, fixed_abs, tag = 'smem constant byte address 0x4 - core index']
  #allocation1 [shape = 'u32[144,128]{1,0:T(1,128)}', space=vmem, size = 0x12000, scoped, tag = 'internal scratch']
  #allocation2 [shape = 'bf16[8,32]{1,0:T(8,128)(2,1)}', space=vmem, size = 0x800, scoped, tag = 'scratch operand']
  #allocation3 [shape = 'bf16[8,32]{1,0:T(8,128)(2,1)}', space=vmem, size = 0x800, scoped, tag = 'scratch operand']
  #allocation4 [shape = 'f32[8,32]{1,0:T(8,128)}', space=vmem, size = 0x1000, scoped, tag = 'scratch operand']
  #allocation5 [shape = 's32[1]{0}', space=sflag, size = 0x4, scoped, tag = 'scoped memory for tpu_custom_call.1']
  #allocation6 [shape = 'u8[512]{0}', space=smem, size = 0x200, scoped, tag = 'prefetched SMEM operand 0']
  %s0 = inlined_call_operand.hbm [shape: s32[2], index: 0, kind: input, shape index: {}]
  %s1 = inlined_call_operand.hbm [shape: f32[2,8,32], index: 1, kind: input, shape index: {}]
  %s2 = inlined_call_operand.hbm [shape: bf16[32,96], index: 2, kind: input, shape index: {}]
  %s3 = inlined_call_operand.vmem [shape: f32[1,96], index: 3, kind: input, shape index: {}]
  %s4 = inlined_call_operand.hbm [shape: bf16[32,32], index: 4, kind: input, shape index: {}]
  %s5 = inlined_call_operand.vmem [shape: f32[1,32], index: 5, kind: input, shape index: {}]
  %s6 = inlined_call_operand.vmem [shape: f32[1,32], index: 6, kind: input, shape index: {}]
  %s7 = inlined_call_operand.vmem [shape: f32[1,32], index: 7, kind: input, shape index: {}]
  %s8 = inlined_call_operand.hbm [shape: f32[2,8,32], index: 8, kind: output, shape index: {}]
  %s9 = sld [smem:[#allocation0]]
  $region77: #{tpu_custom_call.1} parent=0
    _
  %s11 = ssub.s32 1, %s9
  %s12 = scalar_select 0, %s11, %s9
  %14 = dma.hbm_to_smem %s0, 16, [#allocation6], [#allocation5]
  %15 = dma.done [#allocation5], 16
  %16 = sfence
  $region1: #{tpu_custom_call.1} parent=0
    #allocation7 [shape = 'u8[8192]{0}', space=vmem, size = 0x2000, scoped, tag = 'input window, operand 1']
    #allocation8 [shape = 's32[2]{0}', space=sflag, size = 0x8, scoped, tag = 'scoped memory for tpu_custom_call.1']
    #allocation9 [shape = 's32[2]{0}', space=sflag, size = 0x8, scoped, tag = 'scoped memory for tpu_custom_call.1']
    #allocation10 [shape = 'u8[8192]{0}', space=vmem, size = 0x2000, scoped, tag = 'input window, operand 2, single buffered']
    #allocation11 [shape = 's32[1]{0}', space=sflag, size = 0x4, scoped, tag = 'scoped memory for tpu_custom_call.1']
    #allocation12 [shape = 'u8[8192]{0}', space=vmem, size = 0x2000, scoped, tag = 'input window, operand 4, single buffered']
    #allocation13 [shape = 'u8[8192]{0}', space=vmem, size = 0x2000, scoped, tag = 'output window, operand 0']
    %17 = vsyncpa [#allocation8], 0
    %s18 = scalar_lea.sflag [#allocation8], 1
    %19 = vsyncpa %s18, 0
    %20 = vsyncpa [#allocation11], 0
    %21 = vsyncpa [#allocation9], 0
    %s22 = scalar_lea.sflag [#allocation9], 1
    %23 = vsyncpa %s22, 0
    loop: start=0, step=1, limit=4
    $region2: #{tpu_custom_call.1} parent=1 // loop_pre_header
      _
    $region3: #{tpu_custom_call.1} parent=1 // loop_header
      %s25 = sphi 0, %s29
      %p26 = scmp.ge.s32.totalorder %s25, 4
      %s32 = sphi 0, %s44
      %s33 = sphi 0, %s40
      %s34 = sphi 0, %s32
      %s35 = sphi 0, %s33
      %s36 = sphi 0, %s34
      %s37 = sphi 0, %s35
      %s47 = sphi 0, %s49
      %s50 = sphi 0, %s47
      %s51 = sphi 0, %s50
      %s67 = sphi 0, %s51
      %s71 = sphi 0, %s71
      %s73 = sphi 0, %s71
      %s74 = sphi 0, %s73
      %s88 = sphi 0, %s74
      %s92 = sphi 0, %s92
      %s94 = sphi 0, %s92
      %s95 = sphi 0, %s94
      %s109 = sphi 0, %s95
      %s113 = sphi 0, %s113
      %s115 = sphi 0, %s113
      %s116 = sphi 0, %s115
      %s130 = sphi 0, %s116
      %s134 = sphi 0, %s134
      %s136 = sphi 0, %s134
      %s137 = sphi 0, %s136
      %s151 = sphi 0, %s137
      %s155 = sphi 0, %s155
      %s157 = sphi 0, %s155
      %s158 = sphi 0, %s157
      %s172 = sphi 0, %s158
      %s176 = sphi 0, %s176
      %s178 = sphi 0, %s176
      %s179 = sphi 0, %s178
      %s193 = sphi 0, %s179
      %s201 = sphi 0, %s203
      %s204 = sphi 0, %s201
      %s205 = sphi 0, %s204
      %s221 = sphi 0, %s205
    $region4: #{tpu_custom_call.1} parent=1 // loop_header_branch
      %28 = sbr.rel (%p26) target = $region8
    $region5: #{tpu_custom_call.1} parent=1 // loop_body
      %s30 = ssub.s32 %s25, 1
      %s31 = ssub.s32 %s25, 2
      %s38 = sadd.s32 1, %s33
      %p39 = scmp.ge.s32.totalorder %s38, 1
      %s40 = scalar_select %p39, 0, %s38
      %s41 = sadd.s32 1, %s32
      %s42 = scalar_select %p39, %s41, %s32
      %p43 = scmp.ge.s32.totalorder %s42, 2
      %s44 = scalar_select %p43, 0, %s42
      %s45 = ssub.s32 %s32, %s44
      %p46 = scmp.eq.s32.totalorder %s45, 0
      %s48 = sadd.s32 %s47, 1
      %s49 = scalar_select %p46, %s47, %s48
      %p52 = pneg %p46
      %p53 = scmp.eq.s32.totalorder %s25, 1
      %p54 = por %p52, %p53
      %p55 = scmp.ne.s32.totalorder %s47, %s50
      %p56 = scmp.eq.s32.totalorder %s25, 0
      %p57 = por %p55, %p56
      %p58 = scmp.ne.s32.totalorder %s47, %s50
      %p59 = scmp.eq.s32.totalorder %s30, 1
      %p60 = por %p58, %p59
      %p61 = scmp.ne.s32.totalorder %s50, %s51
      %p62 = scmp.eq.s32.totalorder %s30, 0
      %p63 = por %p61, %p62
      %p64 = scmp.ne.s32.totalorder %s50, %s51
      %p65 = scmp.eq.s32.totalorder %s31, 1
      %p66 = por %p64, %p65
      %p68 = scmp.ne.s32.totalorder %s51, %s67
      %p69 = scmp.eq.s32.totalorder %s31, 0
      %p70 = por %p68, %p69
      %s72 = sadd.s32 %s71, 1
      %p75 = scmp.eq.s32.totalorder %s25, 1
      %p76 = scmp.ne.s32.totalorder %s71, %s73
      %p77 = scmp.eq.s32.totalorder %s25, 0
      %p78 = por %p76, %p77
      %p79 = scmp.ne.s32.totalorder %s71, %s73
      %p80 = scmp.eq.s32.totalorder %s30, 1
      %p81 = por %p79, %p80
      %p82 = scmp.ne.s32.totalorder %s73, %s74
      %p83 = scmp.eq.s32.totalorder %s30, 0
      %p84 = por %p82, %p83
      %p85 = scmp.ne.s32.totalorder %s73, %s74
      %p86 = scmp.eq.s32.totalorder %s31, 1
      %p87 = por %p85, %p86
      %p89 = scmp.ne.s32.totalorder %s74, %s88
      %p90 = scmp.eq.s32.totalorder %s31, 0
      %p91 = por %p89, %p90
      %s93 = sadd.s32 %s92, 1
      %p96 = scmp.eq.s32.totalorder %s25, 1
      %p97 = scmp.ne.s32.totalorder %s92, %s94
      %p98 = scmp.eq.s32.totalorder %s25, 0
      %p99 = por %p97, %p98
      %p100 = scmp.ne.s32.totalorder %s92, %s94
      %p101 = scmp.eq.s32.totalorder %s30, 1
      %p102 = por %p100, %p101
      %p103 = scmp.ne.s32.totalorder %s94, %s95
      %p104 = scmp.eq.s32.totalorder %s30, 0
      %p105 = por %p103, %p104
      %p106 = scmp.ne.s32.totalorder %s94, %s95
      %p107 = scmp.eq.s32.totalorder %s31, 1
      %p108 = por %p106, %p107
      %p110 = scmp.ne.s32.totalorder %s95, %s109
      %p111 = scmp.eq.s32.totalorder %s31, 0
      %p112 = por %p110, %p111
      %s114 = sadd.s32 %s113, 1
      %p117 = scmp.eq.s32.totalorder %s25, 1
      %p118 = scmp.ne.s32.totalorder %s113, %s115
      %p119 = scmp.eq.s32.totalorder %s25, 0
      %p120 = por %p118, %p119
      %p121 = scmp.ne.s32.totalorder %s113, %s115
      %p122 = scmp.eq.s32.totalorder %s30, 1
      %p123 = por %p121, %p122
      %p124 = scmp.ne.s32.totalorder %s115, %s116
      %p125 = scmp.eq.s32.totalorder %s30, 0
      %p126 = por %p124, %p125
      %p127 = scmp.ne.s32.totalorder %s115, %s116
      %p128 = scmp.eq.s32.totalorder %s31, 1
      %p129 = por %p127, %p128
      %p131 = scmp.ne.s32.totalorder %s116, %s130
      %p132 = scmp.eq.s32.totalorder %s31, 0
      %p133 = por %p131, %p132
      %s135 = sadd.s32 %s134, 1
      %p138 = scmp.eq.s32.totalorder %s25, 1
      %p139 = scmp.ne.s32.totalorder %s134, %s136
      %p140 = scmp.eq.s32.totalorder %s25, 0
      %p141 = por %p139, %p140
      %p142 = scmp.ne.s32.totalorder %s134, %s136
      %p143 = scmp.eq.s32.totalorder %s30, 1
      %p144 = por %p142, %p143
      %p145 = scmp.ne.s32.totalorder %s136, %s137
      %p146 = scmp.eq.s32.totalorder %s30, 0
      %p147 = por %p145, %p146
      %p148 = scmp.ne.s32.totalorder %s136, %s137
      %p149 = scmp.eq.s32.totalorder %s31, 1
      %p150 = por %p148, %p149
      %p152 = scmp.ne.s32.totalorder %s137, %s151
      %p153 = scmp.eq.s32.totalorder %s31, 0
      %p154 = por %p152, %p153
      %s156 = sadd.s32 %s155, 1
      %p159 = scmp.eq.s32.totalorder %s25, 1
      %p160 = scmp.ne.s32.totalorder %s155, %s157
      %p161 = scmp.eq.s32.totalorder %s25, 0
      %p162 = por %p160, %p161
      %p163 = scmp.ne.s32.totalorder %s155, %s157
      %p164 = scmp.eq.s32.totalorder %s30, 1
      %p165 = por %p163, %p164
      %p166 = scmp.ne.s32.totalorder %s157, %s158
      %p167 = scmp.eq.s32.totalorder %s30, 0
      %p168 = por %p166, %p167
      %p169 = scmp.ne.s32.totalorder %s157, %s158
      %p170 = scmp.eq.s32.totalorder %s31, 1
      %p171 = por %p169, %p170
      %p173 = scmp.ne.s32.totalorder %s158, %s172
      %p174 = scmp.eq.s32.totalorder %s31, 0
      %p175 = por %p173, %p174
      %s177 = sadd.s32 %s176, 1
      %p180 = scmp.eq.s32.totalorder %s25, 1
      %p181 = scmp.ne.s32.totalorder %s176, %s178
      %p182 = scmp.eq.s32.totalorder %s25, 0
      %p183 = por %p181, %p182
      %p184 = scmp.ne.s32.totalorder %s176, %s178
      %p185 = scmp.eq.s32.totalorder %s30, 1
      %p186 = por %p184, %p185
      %p187 = scmp.ne.s32.totalorder %s178, %s179
      %p188 = scmp.eq.s32.totalorder %s30, 0
      %p189 = por %p187, %p188
      %p190 = scmp.ne.s32.totalorder %s178, %s179
      %p191 = scmp.eq.s32.totalorder %s31, 1
      %p192 = por %p190, %p191
      %p194 = scmp.ne.s32.totalorder %s179, %s193
      %p195 = scmp.eq.s32.totalorder %s31, 0
      %p196 = por %p194, %p195
      %s197 = ssub.s32 %s32, %s44
      %s198 = ssub.s32 %s33, %s40
      %s199 = sor.u32 %s197, %s198
      %p200 = scmp.eq.s32.totalorder %s199, 0
      %s202 = sadd.s32 %s201, 1
      %s203 = scalar_select %p200, %s201, %s202
      %p206 = pneg %p200
      %p207 = scmp.eq.s32.totalorder %s25, 1
      %p208 = por %p206, %p207
      %p209 = scmp.ne.s32.totalorder %s201, %s204
      %p210 = scmp.eq.s32.totalorder %s25, 0
      %p211 = por %p209, %p210
      %p212 = scmp.ne.s32.totalorder %s201, %s204
      %p213 = scmp.eq.s32.totalorder %s30, 1
      %p214 = por %p212, %p213
      %p215 = scmp.ne.s32.totalorder %s204, %s205
      %p216 = scmp.eq.s32.totalorder %s30, 0
      %p217 = por %p215, %p216
      %p218 = scmp.ne.s32.totalorder %s204, %s205
      %p219 = scmp.eq.s32.totalorder %s31, 1
      %p220 = por %p218, %p219
      %p222 = scmp.ne.s32.totalorder %s205, %s221
      %p223 = scmp.eq.s32.totalorder %s31, 0
      %p224 = por %p222, %p223
      %p225 = scmp.le.s32.totalorder 1, %s25
      %p226 = scmp.lt.s32.totalorder %s25, 3
      %p227 = pnand %p225, %p226
      %p228 = pneg %p227
      // Predicated region
      $region9: #{tpu_custom_call.1} parent=5 // pred_check
        _
      $region10: #{tpu_custom_call.1} parent=5 // pred_check_branch
        %230 = sbr.rel (%p227) target = $region12
      $region11: #{tpu_custom_call.1} parent=5 // pred_region
        %s231 = ssub.s32 %s25, 1
        // Predicated region
        $region13: #{tpu_custom_call.1} parent=11 // pred_check
          %p232 = pneg %p84
        $region14: #{tpu_custom_call.1} parent=11 // pred_check_branch
          %234 = sbr.rel (%p232) target = $region16
        $region15: #{tpu_custom_call.1} parent=11 // pred_region
          %s236 = ssub.s32 256, 256
          %237 = vsyncadd [#allocation11], %s236
          %s238 = sshll.u32 [#allocation10], 4
          %s239 = int_to_ptr.vmem [resolvable:$true] %s238
          %244 = dma.hbm_to_vmem [thread:$0]  %s2, 256, %s239, [#allocation11], 64, 64, 4
        $region16: #{tpu_custom_call.1} parent=11 // pred_fallthru
          _
        // Predicated region
        $region17: #{tpu_custom_call.1} parent=11 // pred_check
          %p245 = pneg %p105
        $region18: #{tpu_custom_call.1} parent=11 // pred_check_branch
          %247 = sbr.rel (%p245) target = $region20
        $region19: #{tpu_custom_call.1} parent=11 // pred_region
          _
        $region20: #{tpu_custom_call.1} parent=11 // pred_fallthru
          _
        // Predicated region
        $region21: #{tpu_custom_call.1} parent=11 // pred_check
          %p248 = pneg %p126
        $region22: #{tpu_custom_call.1} parent=11 // pred_check_branch
          %250 = sbr.rel (%p248) target = $region24
        $region23: #{tpu_custom_call.1} parent=11 // pred_region
          %s252 = ssub.s32 256, 256
          %253 = vsyncadd [#allocation11], %s252
          %s254 = sshll.u32 [#allocation12], 4
          %s255 = int_to_ptr.vmem [resolvable:$true] %s254
          %260 = dma.hbm_to_vmem [thread:$0]  %s4, 256, %s255, [#allocation11], 64, 64, 4
        $region24: #{tpu_custom_call.1} parent=11 // pred_fallthru
          _
        // Predicated region
        $region25: #{tpu_custom_call.1} parent=11 // pred_check
          %p261 = pneg %p147
        $region26: #{tpu_custom_call.1} parent=11 // pred_check_branch
          %263 = sbr.rel (%p261) target = $region28
        $region27: #{tpu_custom_call.1} parent=11 // pred_region
          _
        $region28: #{tpu_custom_call.1} parent=11 // pred_fallthru
          _
        // Predicated region
        $region29: #{tpu_custom_call.1} parent=11 // pred_check
          %p264 = pneg %p168
        $region30: #{tpu_custom_call.1} parent=11 // pred_check_branch
          %266 = sbr.rel (%p264) target = $region32
        $region31: #{tpu_custom_call.1} parent=11 // pred_region
          _
        $region32: #{tpu_custom_call.1} parent=11 // pred_fallthru
          _
        // Predicated region
        $region33: #{tpu_custom_call.1} parent=11 // pred_check
          %p267 = pneg %p189
        $region34: #{tpu_custom_call.1} parent=11 // pred_check_branch
          %269 = sbr.rel (%p267) target = $region36
        $region35: #{tpu_custom_call.1} parent=11 // pred_region
          _
        $region36: #{tpu_custom_call.1} parent=11 // pred_fallthru
          _
      $region12: #{tpu_custom_call.1} parent=5 // pred_fallthru
        _
      %p270 = scmp.lt.s32.totalorder %s25, 2
      // Predicated region
      $region37: #{tpu_custom_call.1} parent=5 // pred_check
        %p271 = pneg %p270
      $region38: #{tpu_custom_call.1} parent=5 // pred_check_branch
        %273 = sbr.rel (%p271) target = $region40
      $region39: #{tpu_custom_call.1} parent=5 // pred_region
        // Predicated region
        $region41: #{tpu_custom_call.1} parent=39 // pred_check
          %p274 = pneg %p57
        $region42: #{tpu_custom_call.1} parent=39 // pred_check_branch
          %276 = sbr.rel (%p274) target = $region44
        $region43: #{tpu_custom_call.1} parent=39 // pred_region
          %s277 = sand.u32 %s47, 1
          %s278 = scalar_lea.sflag [#allocation8], %s277
          %s279 = sand.u32 %s47, 1
          %s280 = smul.addr %s279, 8
          %s281 = scalar_lea.vmem [#allocation7], %s280
          %s283 = ssub.s32 128, 128
          %284 = vsyncadd %s278, %s283
          %s285 = smul.addr %s32, 128
          %s286 = scalar_lea.hbm %s1, %s285
          %s288 = sshll.u32 %s281, 4
          %s289 = int_to_ptr.vmem [resolvable:$true] %s288
          %291 = dma.hbm_to_vmem [thread:$0]  %s286, 128, %s289, %s278
        $region44: #{tpu_custom_call.1} parent=39 // pred_fallthru
          _
      $region40: #{tpu_custom_call.1} parent=5 // pred_fallthru
        _
      %p292 = scmp.le.s32.totalorder 1, %s25
      %p293 = scmp.lt.s32.totalorder %s25, 3
      %p294 = pnand %p292, %p293
      %p295 = pneg %p294
      // Predicated region
      $region45: #{tpu_custom_call.1} parent=5 // pred_check
        _
      $region46: #{tpu_custom_call.1} parent=5 // pred_check_branch
        %297 = sbr.rel (%p294) target = $region48
      $region47: #{tpu_custom_call.1} parent=5 // pred_region
        %s298 = ssub.s32 %s25, 1
        %s299 = sand.u32 %s50, 1
        %s300 = scalar_lea.sflag [#allocation8], %s299
        %s301 = sand.u32 %s50, 1
        %s302 = smul.addr %s301, 8
        %s303 = scalar_lea.vmem [#allocation7], %s302
        // Predicated region
        $region49: #{tpu_custom_call.1} parent=47 // pred_check
          %p304 = pneg %p63
        $region50: #{tpu_custom_call.1} parent=47 // pred_check_branch
          %306 = sbr.rel (%p304) target = $region52
        $region51: #{tpu_custom_call.1} parent=47 // pred_region
          %307 = dma.done %s300, 128
        $region52: #{tpu_custom_call.1} parent=47 // pred_fallthru
          _
        // Predicated region
        $region53: #{tpu_custom_call.1} parent=47 // pred_check
          %p308 = pneg %p84
        $region54: #{tpu_custom_call.1} parent=47 // pred_check_branch
          %310 = sbr.rel (%p308) target = $region56
        $region55: #{tpu_custom_call.1} parent=47 // pred_region
          %311 = dma.done [#allocation11], 256
        $region56: #{tpu_custom_call.1} parent=47 // pred_fallthru
          _
        // Predicated region
        $region57: #{tpu_custom_call.1} parent=47 // pred_check
          %p312 = pneg %p126
        $region58: #{tpu_custom_call.1} parent=47 // pred_check_branch
          %314 = sbr.rel (%p312) target = $region60
        $region59: #{tpu_custom_call.1} parent=47 // pred_region
          %315 = dma.done [#allocation11], 256
        $region60: #{tpu_custom_call.1} parent=47 // pred_fallthru
          _
        %s316 = sand.u32 %s50, 1
        %s317 = scalar_lea.sflag [#allocation8], %s316
        %s318 = sand.u32 %s50, 1
        %s319 = smul.addr %s318, 8
        %s320 = scalar_lea.vmem [#allocation7], %s319
        %p321 = pneg %p63
        %p322 = pneg %p60
        %p323 = pneg %p84
        %p324 = pneg %p81
        %p325 = pneg %p105
        %p326 = pneg %p102
        %p327 = pneg %p126
        %p328 = pneg %p123
        %p329 = pneg %p147
        %p330 = pneg %p144
        %p331 = pneg %p168
        %p332 = pneg %p165
        %p333 = pneg %p189
        %p334 = pneg %p186
        %p335 = pneg %p217
        %p336 = pneg %p214
        %s337 = sand.u32 %s204, 1
        %s338 = scalar_lea.sflag [#allocation9], %s337
        %s339 = sand.u32 %s204, 1
        %s340 = smul.addr %s339, 8
        %s341 = scalar_lea.vmem [#allocation13], %s340
        %p343 = scmp.eq.s32.totalorder %s35, 0
        // Predicated region
        $region61: #{tpu_custom_call.1} parent=47 // pred_check
          %p344 = pneg %p343
        $region62: #{tpu_custom_call.1} parent=47 // pred_check_branch
          %346 = sbr.rel (%p344) target = $region64
        $region63: #{tpu_custom_call.1} parent=47 // pred_region
          %v347 = vld [vmem:[%s303] sm:$0xff]
          %v348 = vpack.c.bf16 %v347, %v347
          %v349 = vld [vmem:[#allocation10] sm:$0xf]
          %v350 = vld [vmem:[#allocation10 + $0x4] sm:$0xf]
          %v351 = vld [vmem:[#allocation10 + $0x8] sm:$0xf]
          %v352 = vld [vmem:[#allocation10 + $0xc] sm:$0xf]
          %v357 = vunpack.c.l.b16 %v349
          %v358 = vunpack.c.l.b16 %v350
          %v359 = vunpack.c.l.b16 %v351
          %v360 = vunpack.c.l.b16 %v352
          %v361 = vpack.c.b16 %v358, %v357
          %v362 = vpack.c.b16 %v360, %v359
          %363 = vrot.lane.b32.xlu0 %v361, 96
          %v364 = vpop.permute.xlu0 %363
          %365 = vrot.lane.b32.xlu0 %v362, 96
          %v366 = vpop.permute.xlu0 %365
          %vm369 = vcmask 261120
          %v371 = vsel %vm369, %v348, 0
          %373 = vmatprep.subr.bf16.mxu0 0
          %374 = vmatpush1.bf16.msra.mxu0 %v364
          %375 = vmatprep.subr.bf16.mxu0 0
          %376 = vmatpush1.bf16.msra.mxu0 %v366
          %377 = vmatprep.subr.bf16.mxu0 0
          %378 = vmatpush1.bf16.msra.mxu0 0
          %379 = vmatprep.subr.bf16.mxu0 0
          %380 = vmatpush1.bf16.msra.mxu0 0
          %381 = vmatprep.subr.bf16.mxu0 0
          %382 = vmatpush1.bf16.msra.mxu0 0
          %383 = vmatprep.subr.bf16.mxu0 0
          %384 = vmatpush1.bf16.msra.mxu0 0
          %385 = vmatprep.subr.bf16.mxu0 0
          %386 = vmatpush1.bf16.msra.mxu0 0
          %387 = vmatprep.subr.bf16.mxu0 0
          %388 = vmatpush1.bf16.msra.mxu0 0
          %389 = vmatprep.subr.bf16.mxu0 0
          %390 = vmatpush1.bf16.msra.mxu0 0
          %391 = vmatprep.subr.bf16.mxu0 0
          %392 = vmatpush1.bf16.msra.mxu0 0
          %393 = vmatprep.subr.bf16.mxu0 0
          %394 = vmatpush1.bf16.msra.mxu0 0
          %395 = vmatprep.subr.bf16.mxu0 0
          %396 = vmatpush1.bf16.msra.mxu0 0
          %397 = vmatprep.subr.bf16.mxu0 0
          %398 = vmatpush1.bf16.msra.mxu0 0
          %399 = vmatprep.subr.bf16.mxu0 0
          %400 = vmatpush1.bf16.msra.mxu0 0
          %401 = vmatprep.subr.bf16.mxu0 0
          %402 = vmatpush1.bf16.msra.mxu0 0
          %403 = vmatprep.subr.bf16.mxu0 0
          %404 = vmatpush1.bf16.msra.mxu0 0
          %405 = vmatprep.mubr.bf16.mxu0 0
          %406 = vmatmul.mubr.bf16.gmra.mrb[0].mxu0 %v371
          %v407 = vpop.f32.mrb[0].mxu0
          %v408 = vadd.f32 0.0, %v407
          %v409 = vpop.f32.mrb[0].mxu0
          %v410 = vpop.f32.mrb[0].mxu0
          %v411 = vpop.f32.mrb[0].mxu0
          %412 = vdwg.mxu0
          %v413 = vld [vmem:[%s3] sm:$0x1]
          %v415 = vlaneseq
          %v416 = vshrl.u32 %v415, 7
          %v417 = vsub.s32 0, %v416
          %v418 = vrot.slane %v413, %v417
          %419 = vrot.lane.b32.xlu0 %v418, 96
          %v420 = vpop.permute.xlu0 %419
          %v422 = vadd.f32 %v408, %v420
          %v423 = vpack.c.bf16 %v422, %v422
          %vm424 = vcmask 257024
          %425 = vst.msk [vmem:[#allocation2] sm:$0xf] %vm424, %v423
          %v426 = vld [vmem:[%s3] sm:$0x1]
          %v428 = vlaneseq
          %v429 = vshrl.u32 %v428, 7
          %v430 = vsub.s32 0, %v429
          %v431 = vrot.slane %v426, %v430
          %432 = vrot.lane.b32.xlu0 %v431, 96
          %v433 = vpop.permute.xlu0 %432
          %v435 = vadd.f32 %v408, %v433
          %v436 = vpack.c.bf16 %v435, %v435
          %v438 = vunpack.c.l.b16 %v436
          %v439 = vpack.c.b16 %v438, %v438
          %440 = vrot.lane.b32.xlu0 %v439, 96
          %v441 = vpop.permute.xlu0 %440
          %443 = vst.msk [vmem:[#allocation3] sm:$0xf] %vm424, %v441
        $region64: #{tpu_custom_call.1} parent=47 // pred_fallthru
          _
        %s444 = smul.u32 %s35, 8
        %s445 = scalar_lea.vmem %s303, %s444 [#allocation7]
        %v446 = vld [vmem:[%s445] sm:$0xff]
        %v447 = vpack.c.bf16 %v446, %v446
        %v448 = vld [vmem:[#allocation10] sm:$0xf]
        %v449 = vld [vmem:[#allocation10 + $0x4] sm:$0xf]
        %v450 = vld [vmem:[#allocation10 + $0x8] sm:$0xf]
        %v451 = vld [vmem:[#allocation10 + $0xc] sm:$0xf]
        %v452 = vld [vmem:[%s3] sm:$0x1]
        %v454 = vlaneseq
        %v455 = vshrl.u32 %v454, 7
        %v456 = vsub.s32 0, %v455
        %v457 = vrot.slane %v452, %v456
        %v463 = vunpack.c.l.b16 %v448
        %v464 = vunpack.c.l.b16 %v449
        %v465 = vunpack.c.l.b16 %v450
        %v466 = vunpack.c.l.b16 %v451
        %v467 = vpack.c.b16 %v464, %v463
        %v468 = vpack.c.b16 %v466, %v465
        %vm471 = vcmask 261120
        %v473 = vsel %vm471, %v447, 0
        %475 = vmatprep.subr.bf16.mxu0 0
        %476 = vmatpush1.bf16.msra.mxu0 %v467
        %477 = vmatprep.subr.bf16.mxu0 0
        %478 = vmatpush1.bf16.msra.mxu0 %v468
        %479 = vmatprep.subr.bf16.mxu0 0
        %480 = vmatpush1.bf16.msra.mxu0 0
        %481 = vmatprep.subr.bf16.mxu0 0
        %482 = vmatpush1.bf16.msra.mxu0 0
        %483 = vmatprep.subr.bf16.mxu0 0
        %484 = vmatpush1.bf16.msra.mxu0 0
        %485 = vmatprep.subr.bf16.mxu0 0
        %486 = vmatpush1.bf16.msra.mxu0 0
        %487 = vmatprep.subr.bf16.mxu0 0
        %488 = vmatpush1.bf16.msra.mxu0 0
        %489 = vmatprep.subr.bf16.mxu0 0
        %490 = vmatpush1.bf16.msra.mxu0 0
        %491 = vmatprep.subr.bf16.mxu0 0
        %492 = vmatpush1.bf16.msra.mxu0 0
        %493 = vmatprep.subr.bf16.mxu0 0
        %494 = vmatpush1.bf16.msra.mxu0 0
        %495 = vmatprep.subr.bf16.mxu0 0
        %496 = vmatpush1.bf16.msra.mxu0 0
        %497 = vmatprep.subr.bf16.mxu0 0
        %498 = vmatpush1.bf16.msra.mxu0 0
        %499 = vmatprep.subr.bf16.mxu0 0
        %500 = vmatpush1.bf16.msra.mxu0 0
        %501 = vmatprep.subr.bf16.mxu0 0
        %502 = vmatpush1.bf16.msra.mxu0 0
        %503 = vmatprep.subr.bf16.mxu0 0
        %504 = vmatpush1.bf16.msra.mxu0 0
        %505 = vmatprep.subr.bf16.mxu0 0
        %506 = vmatpush1.bf16.msra.mxu0 0
        %507 = vmatprep.mubr.bf16.mxu0 0
        %508 = vmatmul.mubr.bf16.gmra.mrb[0].mxu0 %v473
        %v509 = vpop.f32.mrb[0].mxu0
        %v510 = vadd.f32 %v457, %v509
        %v511 = vpop.f32.mrb[0].mxu0
        %v512 = vpop.f32.mrb[0].mxu0
        %v513 = vpop.f32.mrb[0].mxu0
        %514 = vdwg.mxu0
        %v515 = vlaneseq
        %v516 = vand.u32 %v515, 127
        %s517 = sld [smem:[#allocation6 + %s34]]
        %v518 = vstv %s517
        %vm519 = vcmp.lt.s32.totalorder %v516, %v518
        %v520 = vsel %vm519, 0.0, -1e+09
        %v521 = vpack.c.bf16 %v510, %v510
        %v522 = vld [vmem:[#allocation2] sm:$0xf]
        %vm523 = vcmask 64512
        %v525 = vsel %vm523, %v521, 0
        %v528 = vsel %vm523, %v522, 0
        %530 = vmatprep.subr.bf16.mxu0 0
        %531 = vmatpush1.bf16.xpose.msra.mxu0 %v528
        %532 = vmatprep.subr.bf16.mxu0 0
        %533 = vmatpush1.bf16.xpose.msra.mxu0 0
        %534 = vmatprep.subr.bf16.mxu0 0
        %535 = vmatpush1.bf16.xpose.msra.mxu0 0
        %536 = vmatprep.subr.bf16.mxu0 0
        %537 = vmatpush1.bf16.xpose.msra.mxu0 0
        %538 = vmatprep.subr.bf16.mxu0 0
        %539 = vmatpush1.bf16.xpose.msra.mxu0 0
        %540 = vmatprep.subr.bf16.mxu0 0
        %541 = vmatpush1.bf16.xpose.msra.mxu0 0
        %542 = vmatprep.subr.bf16.mxu0 0
        %543 = vmatpush1.bf16.xpose.msra.mxu0 0
        %544 = vmatprep.subr.bf16.mxu0 0
        %545 = vmatpush1.bf16.xpose.msra.mxu0 0
        %546 = vmatprep.subr.bf16.mxu0 0
        %547 = vmatpush1.bf16.xpose.msra.mxu0 0
        %548 = vmatprep.subr.bf16.mxu0 0
        %549 = vmatpush1.bf16.xpose.msra.mxu0 0
        %550 = vmatprep.subr.bf16.mxu0 0
        %551 = vmatpush1.bf16.xpose.msra.mxu0 0
        %552 = vmatprep.subr.bf16.mxu0 0
        %553 = vmatpush1.bf16.xpose.msra.mxu0 0
        %554 = vmatprep.subr.bf16.mxu0 0
        %555 = vmatpush1.bf16.xpose.msra.mxu0 0
        %556 = vmatprep.subr.bf16.mxu0 0
        %557 = vmatpush1.bf16.xpose.msra.mxu0 0
        %558 = vmatprep.subr.bf16.mxu0 0
        %559 = vmatpush1.bf16.xpose.msra.mxu0 0
        %560 = vmatprep.subr.bf16.mxu0 0
        %561 = vmatpush1.bf16.xpose.msra.mxu0 0
        %562 = vmatprep.mubr.bf16.mxu0 0
        %563 = vmatmul.mubr.bf16.gmra.mrb[0].mxu0 %v525
        %v564 = vpop.f32.mrb[0].mxu0
        %v565 = vadd.f32 %v520, %v564
        %v566 = vpop.f32.mrb[0].mxu0
        %v567 = vpop.f32.mrb[0].mxu0
        %v568 = vpop.f32.mrb[0].mxu0
        %569 = vdwg.mxu0
        %v570 = vsel %vm523, %v565, -inf
        %571 = vmax.xlane.f32.xlu0 %v570
        %v572 = vpop.xlane.xlu0 %571
        %v573 = vsub.f32 %v565, %v572
        %v574 = vmul.f32 %v573, 1.442695
        %v575 = vpow.pop %v574
        %v576 = vsel %vm523, %v575, 0.0
        %577 = vadd.xlane.f32.xlu0 %v576
        %v578 = vpop.xlane.xlu0 %577
        %v579 = vrcp.pop %v578
        %v580 = vmul.f32 %v575, %v579
        %v581 = vpack.c.bf16 %v580, %v580
        %v582 = vld [vmem:[#allocation3] sm:$0xf]
        %v584 = vsel %vm523, %v581, 0
        %vm586 = vcmask 1043456
        %v588 = vsel %vm586, %v582, 0
        %590 = vmatprep.subr.bf16.mxu0 0
        %591 = vmatpush1.bf16.msra.mxu0 %v588
        %592 = vmatprep.subr.bf16.mxu0 0
        %593 = vmatpush1.bf16.msra.mxu0 0
        %594 = vmatprep.subr.bf16.mxu0 0
        %595 = vmatpush1.bf16.msra.mxu0 0
        %596 = vmatprep.subr.bf16.mxu0 0
        %597 = vmatpush1.bf16.msra.mxu0 0
        %598 = vmatprep.subr.bf16.mxu0 0
        %599 = vmatpush1.bf16.msra.mxu0 0
        %600 = vmatprep.subr.bf16.mxu0 0
        %601 = vmatpush1.bf16.msra.mxu0 0
        %602 = vmatprep.subr.bf16.mxu0 0
        %603 = vmatpush1.bf16.msra.mxu0 0
        %604 = vmatprep.subr.bf16.mxu0 0
        %605 = vmatpush1.bf16.msra.mxu0 0
        %606 = vmatprep.subr.bf16.mxu0 0
        %607 = vmatpush1.bf16.msra.mxu0 0
        %608 = vmatprep.subr.bf16.mxu0 0
        %609 = vmatpush1.bf16.msra.mxu0 0
        %610 = vmatprep.subr.bf16.mxu0 0
        %611 = vmatpush1.bf16.msra.mxu0 0
        %612 = vmatprep.subr.bf16.mxu0 0
        %613 = vmatpush1.bf16.msra.mxu0 0
        %614 = vmatprep.subr.bf16.mxu0 0
        %615 = vmatpush1.bf16.msra.mxu0 0
        %616 = vmatprep.subr.bf16.mxu0 0
        %617 = vmatpush1.bf16.msra.mxu0 0
        %618 = vmatprep.subr.bf16.mxu0 0
        %619 = vmatpush1.bf16.msra.mxu0 0
        %620 = vmatprep.subr.bf16.mxu0 0
        %621 = vmatpush1.bf16.msra.mxu0 0
        %622 = vmatprep.mubr.bf16.mxu0 0
        %623 = vmatmul.mubr.bf16.gmra.mrb[0].mxu0 %v584
        %v624 = vpop.f32.mrb[0].mxu0
        %v625 = vadd.f32 0.0, %v624
        %v626 = vpop.f32.mrb[0].mxu0
        %v627 = vpop.f32.mrb[0].mxu0
        %v628 = vpop.f32.mrb[0].mxu0
        %629 = vdwg.mxu0
        %630 = vst.msk [vmem:[#allocation4] sm:$0xff] %vm523, %v625
        %v631 = vld [vmem:[#allocation2] sm:$0xf]
        %633 = vrot.lane.b32.xlu0 %v521, 120
        %v634 = vpop.permute.xlu0 %633
        %v636 = vunpack.c.l.b16 %v631
        %v637 = vpack.c.b16 %v636, %v636
        %638 = vrot.lane.b32.xlu0 %v637, 120
        %v639 = vpop.permute.xlu0 %638
        %v641 = vsel %vm523, %v634, 0
        %v644 = vsel %vm523, %v639, 0
        %646 = vmatprep.subr.bf16.mxu0 0
        %647 = vmatpush1.bf16.xpose.msra.mxu0 %v644
        %648 = vmatprep.subr.bf16.mxu0 0
        %649 = vmatpush1.bf16.xpose.msra.mxu0 0
        %650 = vmatprep.subr.bf16.mxu0 0
        %651 = vmatpush1.bf16.xpose.msra.mxu0 0
        %652 = vmatprep.subr.bf16.mxu0 0
        %653 = vmatpush1.bf16.xpose.msra.mxu0 0
        %654 = vmatprep.subr.bf16.mxu0 0
        %655 = vmatpush1.bf16.xpose.msra.mxu0 0
        %656 = vmatprep.subr.bf16.mxu0 0
        %657 = vmatpush1.bf16.xpose.msra.mxu0 0
        %658 = vmatprep.subr.bf16.mxu0 0
        %659 = vmatpush1.bf16.xpose.msra.mxu0 0
        %660 = vmatprep.subr.bf16.mxu0 0
        %661 = vmatpush1.bf16.xpose.msra.mxu0 0
        %662 = vmatprep.subr.bf16.mxu0 0
        %663 = vmatpush1.bf16.xpose.msra.mxu0 0
        %664 = vmatprep.subr.bf16.mxu0 0
        %665 = vmatpush1.bf16.xpose.msra.mxu0 0
        %666 = vmatprep.subr.bf16.mxu0 0
        %667 = vmatpush1.bf16.xpose.msra.mxu0 0
        %668 = vmatprep.subr.bf16.mxu0 0
        %669 = vmatpush1.bf16.xpose.msra.mxu0 0
        %670 = vmatprep.subr.bf16.mxu0 0
        %671 = vmatpush1.bf16.xpose.msra.mxu0 0
        %672 = vmatprep.subr.bf16.mxu0 0
        %673 = vmatpush1.bf16.xpose.msra.mxu0 0
        %674 = vmatprep.subr.bf16.mxu0 0
        %675 = vmatpush1.bf16.xpose.msra.mxu0 0
        %676 = vmatprep.subr.bf16.mxu0 0
        %677 = vmatpush1.bf16.xpose.msra.mxu0 0
        %678 = vmatprep.mubr.bf16.mxu0 0
        %679 = vmatmul.mubr.bf16.gmra.mrb[0].mxu0 %v641
        %v680 = vpop.f32.mrb[0].mxu0
        %v681 = vadd.f32 %v520, %v680
        %v682 = vpop.f32.mrb[0].mxu0
        %v683 = vpop.f32.mrb[0].mxu0
        %v684 = vpop.f32.mrb[0].mxu0
        %685 = vdwg.mxu0
        %v686 = vsel %vm523, %v681, -inf
        %687 = vmax.xlane.f32.xlu0 %v686
        %v688 = vpop.xlane.xlu0 %687
        %v689 = vsub.f32 %v681, %v688
        %v690 = vmul.f32 %v689, 1.442695
        %v691 = vpow.pop %v690
        %v692 = vsel %vm523, %v691, 0.0
        %693 = vadd.xlane.f32.xlu0 %v692
        %v694 = vpop.xlane.xlu0 %693
        %v695 = vrcp.pop %v694
        %v696 = vmul.f32 %v691, %v695
        %v697 = vpack.c.bf16 %v696, %v696
        %v698 = vld [vmem:[#allocation3] sm:$0xf]
        %v700 = vunpack.c.l.b16 %v698
        %v701 = vpack.c.b16 %v700, %v700
        %702 = vrot.lane.b32.xlu0 %v701, 120
        %v703 = vpop.permute.xlu0 %702
        %v705 = vsel %vm523, %v697, 0
        %v708 = vsel %vm586, %v703, 0
        %710 = vmatprep.subr.bf16.mxu0 0
        %711 = vmatpush1.bf16.msra.mxu0 %v708
        %712 = vmatprep.subr.bf16.mxu0 0
        %713 = vmatpush1.bf16.msra.mxu0 0
        %714 = vmatprep.subr.bf16.mxu0 0
        %715 = vmatpush1.bf16.msra.mxu0 0
        %716 = vmatprep.subr.bf16.mxu0 0
        %717 = vmatpush1.bf16.msra.mxu0 0
        %718 = vmatprep.subr.bf16.mxu0 0
        %719 = vmatpush1.bf16.msra.mxu0 0
        %720 = vmatprep.subr.bf16.mxu0 0
        %721 = vmatpush1.bf16.msra.mxu0 0
        %722 = vmatprep.subr.bf16.mxu0 0
        %723 = vmatpush1.bf16.msra.mxu0 0
        %724 = vmatprep.subr.bf16.mxu0 0
        %725 = vmatpush1.bf16.msra.mxu0 0
        %726 = vmatprep.subr.bf16.mxu0 0
        %727 = vmatpush1.bf16.msra.mxu0 0
        %728 = vmatprep.subr.bf16.mxu0 0
        %729 = vmatpush1.bf16.msra.mxu0 0
        %730 = vmatprep.subr.bf16.mxu0 0
        %731 = vmatpush1.bf16.msra.mxu0 0
        %732 = vmatprep.subr.bf16.mxu0 0
        %733 = vmatpush1.bf16.msra.mxu0 0
        %734 = vmatprep.subr.bf16.mxu0 0
        %735 = vmatpush1.bf16.msra.mxu0 0
        %736 = vmatprep.subr.bf16.mxu0 0
        %737 = vmatpush1.bf16.msra.mxu0 0
        %738 = vmatprep.subr.bf16.mxu0 0
        %739 = vmatpush1.bf16.msra.mxu0 0
        %740 = vmatprep.subr.bf16.mxu0 0
        %741 = vmatpush1.bf16.msra.mxu0 0
        %742 = vmatprep.mubr.bf16.mxu0 0
        %743 = vmatmul.mubr.bf16.gmra.mrb[0].mxu0 %v705
        %v744 = vpop.f32.mrb[0].mxu0
        %v745 = vadd.f32 0.0, %v744
        %v746 = vpop.f32.mrb[0].mxu0
        %v747 = vpop.f32.mrb[0].mxu0
        %v748 = vpop.f32.mrb[0].mxu0
        %749 = vdwg.mxu0
        %751 = vrot.lane.b32.xlu0 %v745, 8
        %v752 = vpop.permute.xlu0 %751
        %vm754 = vcmask 130112
        %755 = vst.msk [vmem:[#allocation4] sm:$0xff] %vm754, %v752
        %v756 = vld [vmem:[#allocation2] sm:$0xf]
        %757 = vrot.lane.b32.xlu0 %v521, 112
        %v758 = vpop.permute.xlu0 %757
        %v760 = vunpack.c.l.b16 %v756
        %v761 = vpack.c.b16 %v760, %v760
        %762 = vrot.lane.b32.xlu0 %v761, 112
        %v763 = vpop.permute.xlu0 %762
        %v765 = vsel %vm523, %v758, 0
        %v768 = vsel %vm523, %v763, 0
        %770 = vmatprep.subr.bf16.mxu0 0
        %771 = vmatpush1.bf16.xpose.msra.mxu0 %v768
        %772 = vmatprep.subr.bf16.mxu0 0
        %773 = vmatpush1.bf16.xpose.msra.mxu0 0
        %774 = vmatprep.subr.bf16.mxu0 0
        %775 = vmatpush1.bf16.xpose.msra.mxu0 0
        %776 = vmatprep.subr.bf16.mxu0 0
        %777 = vmatpush1.bf16.xpose.msra.mxu0 0
        %778 = vmatprep.subr.bf16.mxu0 0
        %779 = vmatpush1.bf16.xpose.msra.mxu0 0
        %780 = vmatprep.subr.bf16.mxu0 0
        %781 = vmatpush1.bf16.xpose.msra.mxu0 0
        %782 = vmatprep.subr.bf16.mxu0 0
        %783 = vmatpush1.bf16.xpose.msra.mxu0 0
        %784 = vmatprep.subr.bf16.mxu0 0
        %785 = vmatpush1.bf16.xpose.msra.mxu0 0
        %786 = vmatprep.subr.bf16.mxu0 0
        %787 = vmatpush1.bf16.xpose.msra.mxu0 0
        %788 = vmatprep.subr.bf16.mxu0 0
        %789 = vmatpush1.bf16.xpose.msra.mxu0 0
        %790 = vmatprep.subr.bf16.mxu0 0
        %791 = vmatpush1.bf16.xpose.msra.mxu0 0
        %792 = vmatprep.subr.bf16.mxu0 0
        %793 = vmatpush1.bf16.xpose.msra.mxu0 0
        %794 = vmatprep.subr.bf16.mxu0 0
        %795 = vmatpush1.bf16.xpose.msra.mxu0 0
        %796 = vmatprep.subr.bf16.mxu0 0
        %797 = vmatpush1.bf16.xpose.msra.mxu0 0
        %798 = vmatprep.subr.bf16.mxu0 0
        %799 = vmatpush1.bf16.xpose.msra.mxu0 0
        %800 = vmatprep.subr.bf16.mxu0 0
        %801 = vmatpush1.bf16.xpose.msra.mxu0 0
        %802 = vmatprep.mubr.bf16.mxu0 0
        %803 = vmatmul.mubr.bf16.gmra.mrb[0].mxu0 %v765
        %v804 = vpop.f32.mrb[0].mxu0
        %v805 = vadd.f32 %v520, %v804
        %v806 = vpop.f32.mrb[0].mxu0
        %v807 = vpop.f32.mrb[0].mxu0
        %v808 = vpop.f32.mrb[0].mxu0
        %809 = vdwg.mxu0
        %v810 = vsel %vm523, %v805, -inf
        %811 = vmax.xlane.f32.xlu0 %v810
        %v812 = vpop.xlane.xlu0 %811
        %v813 = vsub.f32 %v805, %v812
        %v814 = vmul.f32 %v813, 1.442695
        %v815 = vpow.pop %v814
        %v816 = vsel %vm523, %v815, 0.0
        %817 = vadd.xlane.f32.xlu0 %v816
        %v818 = vpop.xlane.xlu0 %817
        %v819 = vrcp.pop %v818
        %v820 = vmul.f32 %v815, %v819
        %v821 = vpack.c.bf16 %v820, %v820
        %v822 = vld [vmem:[#allocation3] sm:$0xf]
        %v824 = vunpack.c.l.b16 %v822
        %v825 = vpack.c.b16 %v824, %v824
        %826 = vrot.lane.b32.xlu0 %v825, 112
        %v827 = vpop.permute.xlu0 %826
        %v829 = vsel %vm523, %v821, 0
        %v832 = vsel %vm586, %v827, 0
        %834 = vmatprep.subr.bf16.mxu0 0
        %835 = vmatpush1.bf16.msra.mxu0 %v832
        %836 = vmatprep.subr.bf16.mxu0 0
        %837 = vmatpush1.bf16.msra.mxu0 0
        %838 = vmatprep.subr.bf16.mxu0 0
        %839 = vmatpush1.bf16.msra.mxu0 0
        %840 = vmatprep.subr.bf16.mxu0 0
        %841 = vmatpush1.bf16.msra.mxu0 0
        %842 = vmatprep.subr.bf16.mxu0 0
        %843 = vmatpush1.bf16.msra.mxu0 0
        %844 = vmatprep.subr.bf16.mxu0 0
        %845 = vmatpush1.bf16.msra.mxu0 0
        %846 = vmatprep.subr.bf16.mxu0 0
        %847 = vmatpush1.bf16.msra.mxu0 0
        %848 = vmatprep.subr.bf16.mxu0 0
        %849 = vmatpush1.bf16.msra.mxu0 0
        %850 = vmatprep.subr.bf16.mxu0 0
        %851 = vmatpush1.bf16.msra.mxu0 0
        %852 = vmatprep.subr.bf16.mxu0 0
        %853 = vmatpush1.bf16.msra.mxu0 0
        %854 = vmatprep.subr.bf16.mxu0 0
        %855 = vmatpush1.bf16.msra.mxu0 0
        %856 = vmatprep.subr.bf16.mxu0 0
        %857 = vmatpush1.bf16.msra.mxu0 0
        %858 = vmatprep.subr.bf16.mxu0 0
        %859 = vmatpush1.bf16.msra.mxu0 0
        %860 = vmatprep.subr.bf16.mxu0 0
        %861 = vmatpush1.bf16.msra.mxu0 0
        %862 = vmatprep.subr.bf16.mxu0 0
        %863 = vmatpush1.bf16.msra.mxu0 0
        %864 = vmatprep.subr.bf16.mxu0 0
        %865 = vmatpush1.bf16.msra.mxu0 0
        %866 = vmatprep.mubr.bf16.mxu0 0
        %867 = vmatmul.mubr.bf16.gmra.mrb[0].mxu0 %v829
        %v868 = vpop.f32.mrb[0].mxu0
        %v869 = vadd.f32 0.0, %v868
        %v870 = vpop.f32.mrb[0].mxu0
        %v871 = vpop.f32.mrb[0].mxu0
        %v872 = vpop.f32.mrb[0].mxu0
        %873 = vdwg.mxu0
        %875 = vrot.lane.b32.xlu0 %v869, 16
        %v876 = vpop.permute.xlu0 %875
        %vm878 = vcmask 195712
        %879 = vst.msk [vmem:[#allocation4] sm:$0xff] %vm878, %v876
        %v880 = vld [vmem:[#allocation2] sm:$0xf]
        %881 = vrot.lane.b32.xlu0 %v521, 104
        %v882 = vpop.permute.xlu0 %881
        %v884 = vunpack.c.l.b16 %v880
        %v885 = vpack.c.b16 %v884, %v884
        %886 = vrot.lane.b32.xlu0 %v885, 104
        %v887 = vpop.permute.xlu0 %886
        %v889 = vsel %vm523, %v882, 0
        %v892 = vsel %vm523, %v887, 0
        %894 = vmatprep.subr.bf16.mxu0 0
        %895 = vmatpush1.bf16.xpose.msra.mxu0 %v892
        %896 = vmatprep.subr.bf16.mxu0 0
        %897 = vmatpush1.bf16.xpose.msra.mxu0 0
        %898 = vmatprep.subr.bf16.mxu0 0
        %899 = vmatpush1.bf16.xpose.msra.mxu0 0
        %900 = vmatprep.subr.bf16.mxu0 0
        %901 = vmatpush1.bf16.xpose.msra.mxu0 0
        %902 = vmatprep.subr.bf16.mxu0 0
        %903 = vmatpush1.bf16.xpose.msra.mxu0 0
        %904 = vmatprep.subr.bf16.mxu0 0
        %905 = vmatpush1.bf16.xpose.msra.mxu0 0
        %906 = vmatprep.subr.bf16.mxu0 0
        %907 = vmatpush1.bf16.xpose.msra.mxu0 0
        %908 = vmatprep.subr.bf16.mxu0 0
        %909 = vmatpush1.bf16.xpose.msra.mxu0 0
        %910 = vmatprep.subr.bf16.mxu0 0
        %911 = vmatpush1.bf16.xpose.msra.mxu0 0
        %912 = vmatprep.subr.bf16.mxu0 0
        %913 = vmatpush1.bf16.xpose.msra.mxu0 0
        %914 = vmatprep.subr.bf16.mxu0 0
        %915 = vmatpush1.bf16.xpose.msra.mxu0 0
        %916 = vmatprep.subr.bf16.mxu0 0
        %917 = vmatpush1.bf16.xpose.msra.mxu0 0
        %918 = vmatprep.subr.bf16.mxu0 0
        %919 = vmatpush1.bf16.xpose.msra.mxu0 0
        %920 = vmatprep.subr.bf16.mxu0 0
        %921 = vmatpush1.bf16.xpose.msra.mxu0 0
        %922 = vmatprep.subr.bf16.mxu0 0
        %923 = vmatpush1.bf16.xpose.msra.mxu0 0
        %924 = vmatprep.subr.bf16.mxu0 0
        %925 = vmatpush1.bf16.xpose.msra.mxu0 0
        %926 = vmatprep.mubr.bf16.mxu0 0
        %927 = vmatmul.mubr.bf16.gmra.mrb[0].mxu0 %v889
        %v928 = vpop.f32.mrb[0].mxu0
        %v929 = vadd.f32 %v520, %v928
        %v930 = vpop.f32.mrb[0].mxu0
        %v931 = vpop.f32.mrb[0].mxu0
        %v932 = vpop.f32.mrb[0].mxu0
        %933 = vdwg.mxu0
        %v934 = vsel %vm523, %v929, -inf
        %935 = vmax.xlane.f32.xlu0 %v934
        %v936 = vpop.xlane.xlu0 %935
        %v937 = vsub.f32 %v929, %v936
        %v938 = vmul.f32 %v937, 1.442695
        %v939 = vpow.pop %v938
        %v940 = vsel %vm523, %v939, 0.0
        %941 = vadd.xlane.f32.xlu0 %v940
        %v942 = vpop.xlane.xlu0 %941
        %v943 = vrcp.pop %v942
        %v944 = vmul.f32 %v939, %v943
        %v945 = vpack.c.bf16 %v944, %v944
        %v946 = vld [vmem:[#allocation3] sm:$0xf]
        %v948 = vunpack.c.l.b16 %v946
        %v949 = vpack.c.b16 %v948, %v948
        %950 = vrot.lane.b32.xlu0 %v949, 104
        %v951 = vpop.permute.xlu0 %950
        %v953 = vsel %vm523, %v945, 0
        %v956 = vsel %vm586, %v951, 0
        %958 = vmatprep.subr.bf16.mxu0 0
        %959 = vmatpush1.bf16.msra.mxu0 %v956
        %960 = vmatprep.subr.bf16.mxu0 0
        %961 = vmatpush1.bf16.msra.mxu0 0
        %962 = vmatprep.subr.bf16.mxu0 0
        %963 = vmatpush1.bf16.msra.mxu0 0
        %964 = vmatprep.subr.bf16.mxu0 0
        %965 = vmatpush1.bf16.msra.mxu0 0
        %966 = vmatprep.subr.bf16.mxu0 0
        %967 = vmatpush1.bf16.msra.mxu0 0
        %968 = vmatprep.subr.bf16.mxu0 0
        %969 = vmatpush1.bf16.msra.mxu0 0
        %970 = vmatprep.subr.bf16.mxu0 0
        %971 = vmatpush1.bf16.msra.mxu0 0
        %972 = vmatprep.subr.bf16.mxu0 0
        %973 = vmatpush1.bf16.msra.mxu0 0
        %974 = vmatprep.subr.bf16.mxu0 0
        %975 = vmatpush1.bf16.msra.mxu0 0
        %976 = vmatprep.subr.bf16.mxu0 0
        %977 = vmatpush1.bf16.msra.mxu0 0
        %978 = vmatprep.subr.bf16.mxu0 0
        %979 = vmatpush1.bf16.msra.mxu0 0
        %980 = vmatprep.subr.bf16.mxu0 0
        %981 = vmatpush1.bf16.msra.mxu0 0
        %982 = vmatprep.subr.bf16.mxu0 0
        %983 = vmatpush1.bf16.msra.mxu0 0
        %984 = vmatprep.subr.bf16.mxu0 0
        %985 = vmatpush1.bf16.msra.mxu0 0
        %986 = vmatprep.subr.bf16.mxu0 0
        %987 = vmatpush1.bf16.msra.mxu0 0
        %988 = vmatprep.subr.bf16.mxu0 0
        %989 = vmatpush1.bf16.msra.mxu0 0
        %990 = vmatprep.mubr.bf16.mxu0 0
        %991 = vmatmul.mubr.bf16.gmra.mrb[0].mxu0 %v953
        %v992 = vpop.f32.mrb[0].mxu0
        %v993 = vadd.f32 0.0, %v992
        %v994 = vpop.f32.mrb[0].mxu0
        %v995 = vpop.f32.mrb[0].mxu0
        %v996 = vpop.f32.mrb[0].mxu0
        %997 = vdwg.mxu0
        %999 = vrot.lane.b32.xlu0 %v993, 24
        %v1000 = vpop.permute.xlu0 %999
        %vm1002 = vcmask 261312
        %1003 = vst.msk [vmem:[#allocation4] sm:$0xff] %vm1002, %v1000
        %v1004 = vld [vmem:[#allocation4] sm:$0xff]
        %v1005 = vpack.c.bf16 %v1004, %v1004
        %v1006 = vld [vmem:[#allocation12] sm:$0xf]
        %v1007 = vld [vmem:[#allocation12 + $0x4] sm:$0xf]
        %v1008 = vld [vmem:[#allocation12 + $0x8] sm:$0xf]
        %v1009 = vld [vmem:[#allocation12 + $0xc] sm:$0xf]
        %v1010 = vld [vmem:[%s5] sm:$0x1]
        %v1012 = vlaneseq
        %v1013 = vshrl.u32 %v1012, 7
        %v1014 = vsub.s32 0, %v1013
        %v1015 = vrot.slane %v1010, %v1014
        %v1021 = vunpack.c.l.b16 %v1006
        %v1022 = vunpack.c.l.b16 %v1007
        %v1023 = vunpack.c.l.b16 %v1008
        %v1024 = vunpack.c.l.b16 %v1009
        %v1025 = vpack.c.b16 %v1022, %v1021
        %v1026 = vpack.c.b16 %v1024, %v1023
        %v1030 = vsel %vm471, %v1005, 0
        %1032 = vmatprep.subr.bf16.mxu0 0
        %1033 = vmatpush1.bf16.msra.mxu0 %v1025
        %1034 = vmatprep.subr.bf16.mxu0 0
        %1035 = vmatpush1.bf16.msra.mxu0 %v1026
        %1036 = vmatprep.subr.bf16.mxu0 0
        %1037 = vmatpush1.bf16.msra.mxu0 0
        %1038 = vmatprep.subr.bf16.mxu0 0
        %1039 = vmatpush1.bf16.msra.mxu0 0
        %1040 = vmatprep.subr.bf16.mxu0 0
        %1041 = vmatpush1.bf16.msra.mxu0 0
        %1042 = vmatprep.subr.bf16.mxu0 0
        %1043 = vmatpush1.bf16.msra.mxu0 0
        %1044 = vmatprep.subr.bf16.mxu0 0
        %1045 = vmatpush1.bf16.msra.mxu0 0
        %1046 = vmatprep.subr.bf16.mxu0 0
        %1047 = vmatpush1.bf16.msra.mxu0 0
        %1048 = vmatprep.subr.bf16.mxu0 0
        %1049 = vmatpush1.bf16.msra.mxu0 0
        %1050 = vmatprep.subr.bf16.mxu0 0
        %1051 = vmatpush1.bf16.msra.mxu0 0
        %1052 = vmatprep.subr.bf16.mxu0 0
        %1053 = vmatpush1.bf16.msra.mxu0 0
        %1054 = vmatprep.subr.bf16.mxu0 0
        %1055 = vmatpush1.bf16.msra.mxu0 0
        %1056 = vmatprep.subr.bf16.mxu0 0
        %1057 = vmatpush1.bf16.msra.mxu0 0
        %1058 = vmatprep.subr.bf16.mxu0 0
        %1059 = vmatpush1.bf16.msra.mxu0 0
        %1060 = vmatprep.subr.bf16.mxu0 0
        %1061 = vmatpush1.bf16.msra.mxu0 0
        %1062 = vmatprep.subr.bf16.mxu0 0
        %1063 = vmatpush1.bf16.msra.mxu0 0
        %1064 = vmatprep.mubr.bf16.mxu0 0
        %1065 = vmatmul.mubr.bf16.gmra.mrb[0].mxu0 %v1030
        %v1066 = vpop.f32.mrb[0].mxu0
        %v1067 = vadd.f32 %v1015, %v1066
        %v1068 = vpop.f32.mrb[0].mxu0
        %v1069 = vpop.f32.mrb[0].mxu0
        %v1070 = vpop.f32.mrb[0].mxu0
        %1071 = vdwg.mxu0
        %v1072 = vadd.f32 %v446, %v1067
        %v1073 = vsel %vm471, %v1072, 0.0
        %1074 = vadd.xlane.f32.xlu0 %v1073
        %v1075 = vpop.xlane.xlu0 %1074
        %v1076 = vrcp.pop 32.0
        %v1077 = vmul.f32 %v1075, %v1076
        %v1078 = vsub.f32 %v1072, %v1077
        %v1079 = vmul.f32 %v1078, %v1078
        %v1080 = vsel %vm471, %v1079, 0.0
        %1081 = vadd.xlane.f32.xlu0 %v1080
        %v1082 = vpop.xlane.xlu0 %1081
        %v1083 = vmul.f32 %v1082, %v1076
        %v1084 = vadd.f32 %v1083, 1e-05
        %v1085 = vrsqrt.pop %v1084
        %v1086 = vmul.f32 %v1078, %v1085
        %v1087 = vld [vmem:[%s6] sm:$0x1]
        %v1089 = vlaneseq
        %v1090 = vshrl.u32 %v1089, 7
        %v1091 = vsub.s32 0, %v1090
        %v1092 = vrot.slane %v1087, %v1091
        %v1094 = vmul.f32 %v1086, %v1092
        %v1095 = vld [vmem:[%s7] sm:$0x1]
        %v1097 = vlaneseq
        %v1098 = vshrl.u32 %v1097, 7
        %v1099 = vsub.s32 0, %v1098
        %v1100 = vrot.slane %v1095, %v1099
        %v1102 = vadd.f32 %v1094, %v1100
        %1103 = vst.msk [vmem:[%s341] sm:$0xff] %vm471, %v1102
        %s1104 = sand.u32 %s204, 1
        %s1105 = scalar_lea.sflag [#allocation9], %s1104
        %s1106 = sand.u32 %s204, 1
        %s1107 = smul.addr %s1106, 8
        %s1108 = scalar_lea.vmem [#allocation13], %s1107
        // Predicated region
        $region65: #{tpu_custom_call.1} parent=47 // pred_check
          %p1109 = pneg %p214
        $region66: #{tpu_custom_call.1} parent=47 // pred_check_branch
          %1111 = sbr.rel (%p1109) target = $region68
        $region67: #{tpu_custom_call.1} parent=47 // pred_region
          %s1113 = ssub.s32 128, 128
          %1114 = vsyncadd %s1105, %s1113
          %s1115 = sadd.s32 %s35, %s34
          %s1116 = smul.addr %s1115, 128
          %s1117 = scalar_lea.hbm %s8, %s1116
          %s1119 = sshll.u32 %s1108, 4
          %s1120 = int_to_ptr.vmem [resolvable:$true] %s1119
          %1122 = dma.vmem_to_hbm [thread:$0]  %s1120, 128, %s1117, %s1105
        $region68: #{tpu_custom_call.1} parent=47 // pred_fallthru
          _
      $region48: #{tpu_custom_call.1} parent=5 // pred_fallthru
        _
      %p1123 = scmp.le.s32.totalorder 2, %s25
      // Predicated region
      $region69: #{tpu_custom_call.1} parent=5 // pred_check
        %p1124 = pneg %p1123
      $region70: #{tpu_custom_call.1} parent=5 // pred_check_branch
        %1126 = sbr.rel (%p1124) target = $region72
      $region71: #{tpu_custom_call.1} parent=5 // pred_region
        %s1127 = ssub.s32 %s25, 2
        // Predicated region
        $region73: #{tpu_custom_call.1} parent=71 // pred_check
          %p1128 = pneg %p220
        $region74: #{tpu_custom_call.1} parent=71 // pred_check_branch
          %1130 = sbr.rel (%p1128) target = $region76
        $region75: #{tpu_custom_call.1} parent=71 // pred_region
          %s1131 = sand.u32 %s205, 1
          %s1132 = scalar_lea.sflag [#allocation9], %s1131
          %s1133 = sand.u32 %s205, 1
          %s1134 = smul.addr %s1133, 8
          %s1135 = scalar_lea.vmem [#allocation13], %s1134
          %1136 = dma.done %s1132, 128
        $region76: #{tpu_custom_call.1} parent=71 // pred_fallthru
          _
      $region72: #{tpu_custom_call.1} parent=5 // pred_fallthru
        _
    $region6: #{tpu_custom_call.1} parent=1 // loop_footer
      %s29 = sadd.s32 1, %s25
    $region7: #{tpu_custom_call.1} parent=1 // loop_footer_branch
      %24 = sbr.rel target = $region3
    $region8: #{tpu_custom_call.1} parent=1 // loop_exit
      _
    %1137 = vsyncpa [#allocation8], 1
    %s1138 = scalar_lea.sflag [#allocation8], 1
    %1139 = vsyncpa %s1138, 1
    %1140 = vsyncpa [#allocation11], 1
    %1141 = vsyncpa [#allocation9], 1
    %s1142 = scalar_lea.sflag [#allocation9], 1
    %1143 = vsyncpa %s1142, 1

</llo_original>
